<compile_context>
chip_gen: v7x
topology: tpu7x:2x2x1
jax: 0.10.0
libtpu: 0.0.40
codegen_flags: <defaults>
</compile_context>

<pallas_src>
import math
import jax
import jax.numpy as jnp
from jax import lax
from jax.experimental import pallas as pl
from jax.experimental.pallas import tpu as pltpu


# ----------------------------------------------------------------------------
# Data-dependent point ops (plain JAX).
# ----------------------------------------------------------------------------
def furthest_point_sample(coor, n_samples):
    """coor: (B, N, 3) -> (B, n_samples) int32 indices.  Matches pointnet2 FPS."""
    # TODO(synk): FPS is an inherently sequential data-dependent argmax loop;
    # kept in plain JAX rather than Pallas.
    B, N, _ = coor.shape

    def body(i, carry):
        idxs, min_d, last = carry
        last_pt = jax.vmap(lambda c, j: c[j])(coor, last)           # (B, 3)
        d = jnp.sum((coor - last_pt[:, None, :]) ** 2, axis=-1)      # (B, N)
        min_d = jnp.minimum(min_d, d)
        nxt = jnp.argmax(min_d, axis=-1).astype(jnp.int32)
        idxs = idxs.at[:, i].set(nxt)
        return idxs, min_d, nxt

    carry = (jnp.zeros((B, n_samples), jnp.int32),
             jnp.full((B, N), 1e10, jnp.float32),
             jnp.zeros((B,), jnp.int32))
    idxs, _, _ = lax.fori_loop(1, n_samples, body, carry)
    return idxs


def ball_query(radius, nsample, xyz, new_xyz):
    """xyz: (B,N,3), new_xyz: (B,S,3) -> (B,S,nsample) int32.
    Matches pointnet2 ball_query: first `nsample` points within radius (in
    index order); unfilled slots repeat the first found index."""
    # TODO(synk): ball query is a data-dependent gather; kept in plain JAX.
    d2 = jnp.sum((new_xyz[:, :, None, :] - xyz[:, None, :, :]) ** 2, axis=-1)
    mask = d2 < radius * radius                                      # (B,S,N)
    rank = jnp.cumsum(mask.astype(jnp.int32), axis=-1)               # 1-based
    first = jnp.argmax(mask, axis=-1).astype(jnp.int32)
    slots = []
    for j in range(nsample):
        sel = mask & (rank == (j + 1))
        has = jnp.any(sel, axis=-1)
        idx_j = jnp.argmax(sel, axis=-1).astype(jnp.int32)
        slots.append(jnp.where(has, idx_j, first))
    return jnp.stack(slots, axis=-1)                                 # (B,S,ns)


# ----------------------------------------------------------------------------
# Fused Pallas kernel: LN(q) + LN(k) + q/k projections + cross attention +
# residual adds.  One grid step per batch element.
# ----------------------------------------------------------------------------
def encoder_core_pallas(sample_x, x_2, v, sample_coor, params):
    B, S, C = sample_x.shape
    VPAD = 128                                   # lane-dense pad for 3-wide coords
    scale = 1.0 / math.sqrt(float(C))            # num_heads=1, qk_scale=None

    v_pad = jnp.pad(v, ((0, 0), (0, 0), (0, VPAD - v.shape[-1])))
    sc_pad = jnp.pad(sample_coor, ((0, 0), (0, 0), (0, VPAD - sample_coor.shape[-1])))

    gq = params["ln_q_gamma"].reshape(1, C)
    bq = params["ln_q_beta"].reshape(1, C)
    gk = params["ln_k_gamma"].reshape(1, C)
    bk = params["ln_k_beta"].reshape(1, C)
    wq = params["wq"]                            # (C, C) == q_map.weight.T
    wk = params["wk"]                            # (C, C) == k_map.weight.T

    def kernel(sx_ref, x2_ref, v_ref, sc_ref,
               gq_ref, bq_ref, gk_ref, bk_ref, wq_ref, wk_ref,
               xo_ref, co_ref):
        f32 = jnp.float32
        sx = sx_ref[0].astype(f32)               # (S, C)
        x2 = x2_ref[0].astype(f32)               # (S, C)

        def layer_norm(z, g, b):                 # torch LayerNorm, eps=1e-5
            mu = jnp.mean(z, axis=-1, keepdims=True)
            zc = z - mu
            var = jnp.mean(zc * zc, axis=-1, keepdims=True)
            return zc * lax.rsqrt(var + 1e-5) * g + b

        nq = layer_norm(x2, gq_ref[...].astype(f32), bq_ref[...].astype(f32))
        nk = layer_norm(sx, gk_ref[...].astype(f32), bk_ref[...].astype(f32))

        # q/k projections: native-dtype operands on the MXU, f32 accumulation.
        q = jnp.dot(nq.astype(wq_ref.dtype), wq_ref[...],
                    preferred_element_type=f32)                      # (S, C)
        k = jnp.dot(nk.astype(wk_ref.dtype), wk_ref[...],
                    preferred_element_type=f32)                      # (S, C)

        # attention scores q @ k^T (contract feature dim), softmax over keys.
        s = lax.dot_general(q, k, (((1,), (1,)), ((), ())),
                            preferred_element_type=f32) * scale      # (S, S)
        m = jnp.max(s, axis=-1, keepdims=True)
        p = jnp.exp(s - m)
        attn = p / jnp.sum(p, axis=-1, keepdims=True)

        vv = v_ref[0].astype(f32)                                    # (S, VPAD)
        coor2 = jnp.dot(attn, vv, preferred_element_type=f32)        # (S, VPAD)

        xo_ref[0] = (sx + x2).astype(xo_ref.dtype)
        co_ref[0] = (sc_ref[0].astype(f32) + coor2).astype(co_ref.dtype)

    flops = B * (4 * S * C * C + 2 * S * S * C + 2 * S * S * VPAD)
    bytes_accessed = 4 * (B * S * (3 * C + 3 * VPAD) + 2 * C * C + 4 * C)
    cost = pl.CostEstimate(flops=flops, transcendentals=B * S * S,
                           bytes_accessed=bytes_accessed)

    x_out, coor_out_pad = pl.pallas_call(
        kernel,
        out_shape=(jax.ShapeDtypeStruct((B, S, C), sample_x.dtype),
                   jax.ShapeDtypeStruct((B, S, VPAD), sample_coor.dtype)),
        grid_spec=pltpu.PrefetchScalarGridSpec(
            num_scalar_prefetch=0,
            grid=(B,),
            in_specs=[
                pl.BlockSpec((1, S, C), lambda b: (b, 0, 0)),        # sample_x
                pl.BlockSpec((1, S, C), lambda b: (b, 0, 0)),        # x_2
                pl.BlockSpec((1, S, VPAD), lambda b: (b, 0, 0)),     # v (padded)
                pl.BlockSpec((1, S, VPAD), lambda b: (b, 0, 0)),     # sample_coor (padded)
                pl.BlockSpec((1, C), lambda b: (0, 0)),              # ln_q gamma
                pl.BlockSpec((1, C), lambda b: (0, 0)),              # ln_q beta
                pl.BlockSpec((1, C), lambda b: (0, 0)),              # ln_k gamma
                pl.BlockSpec((1, C), lambda b: (0, 0)),              # ln_k beta
                pl.BlockSpec((C, C), lambda b: (0, 0)),              # wq
                pl.BlockSpec((C, C), lambda b: (0, 0)),              # wk
            ],
            out_specs=(
                pl.BlockSpec((1, S, C), lambda b: (b, 0, 0)),
                pl.BlockSpec((1, S, VPAD), lambda b: (b, 0, 0)),
            ),
        ),
        compiler_params=pltpu.CompilerParams(
            dimension_semantics=("parallel",)),
        cost_estimate=cost,
    )(sample_x, x_2, v_pad, sc_pad, gq, bq, gk, bk, wq, wk)

    return x_out, coor_out_pad[..., :3]


def encoder_core_reference(sample_x, x_2, v, sample_coor, params):
    """Pure-JAX reference of the fused core (for validation)."""
    C = sample_x.shape[-1]
    scale = 1.0 / math.sqrt(float(C))
    hi = lax.Precision.HIGHEST

    def layer_norm(z, g, b):
        mu = jnp.mean(z, axis=-1, keepdims=True)
        var = jnp.mean((z - mu) ** 2, axis=-1, keepdims=True)
        return (z - mu) / jnp.sqrt(var + 1e-5) * g + b

    nq = layer_norm(x_2, params["ln_q_gamma"], params["ln_q_beta"])
    nk = layer_norm(sample_x, params["ln_k_gamma"], params["ln_k_beta"])
    q = jnp.einsum("bnc,cd->bnd", nq, params["wq"], precision=hi)
    k = jnp.einsum("bnc,cd->bnd", nk, params["wk"], precision=hi)
    s = jnp.einsum("bnc,bmc->bnm", q, k, precision=hi) * scale
    attn = jax.nn.softmax(s, axis=-1)
    coor2 = jnp.einsum("bnm,bmd->bnd", attn, v, precision=hi)
    return sample_x + x_2, sample_coor + coor2


# ----------------------------------------------------------------------------
# Full EncoderBlock.forward
# ----------------------------------------------------------------------------
def encoder_block_forward(x, coor, params, use_pallas=True):
    """x: (B, N, 256) features, coor: (B, N, 3).  Returns (sample_x, sample_coor)."""
    B, N, C = x.shape
    S, NSAMPLE, RADIUS = 64, 8, 4.0

    take = lambda arr, ind: jax.vmap(lambda a, i: a[i])(arr, ind)

    # furthest point sampling + gathers
    idx = furthest_point_sample(coor, S)                             # (B, S)
    sample_coor = take(coor, idx)                                    # (B, S, 3)
    sample_x = take(x, idx)                                          # (B, S, C)

    # QueryAndGroup(radius=4, nsample=8): relative xyz + grouped features
    gidx = ball_query(RADIUS, NSAMPLE, coor, sample_coor)            # (B, S, ns)
    grouped_xyz = take(coor, gidx) - sample_coor[:, :, None, :]      # (B,S,ns,3)
    grouped_feat = take(x, gidx)                                     # (B,S,ns,C)

    # local max-pool / mean  (torch.max(local_x,-1), torch.mean(local_coor,-1))
    global_x = jnp.max(grouped_feat, axis=2)                         # (B, S, C)
    x_2 = global_x - sample_x                                        # diff_x^T
    diff_coor = jnp.mean(grouped_xyz, axis=2)                        # (B, S, 3)

    # Reproduce the original module's `v = diff_coor.view(B, NK, heads, -1)`:
    # torch diff_coor is (B, 3, S); the .view reinterprets that contiguous
    # memory as (B, S, 3).  Build the (B,3,S) layout and reshape row-major.
    v = jnp.transpose(diff_coor, (0, 2, 1)).reshape(B, S, 3)

    if use_pallas:
        return encoder_core_pallas(sample_x, x_2, v, sample_coor, params)
    return encoder_core_reference(sample_x, x_2, v, sample_coor, params)


if __name__ == "__main__":
    # Small shapes consistent with the module: dim=256 (hard-coded gathers/
    # reshapes in the forward), num_point=128 input points, 64 FPS samples.
    B, N, C = 2, 128, 256

    key = jax.random.PRNGKey(0)
    k1, k2, k3, k4, k5, k6, k7, k8 = jax.random.split(key, 8)
    x = jax.random.normal(k1, (B, N, C), jnp.float32)
    coor = jax.random.normal(k2, (B, N, 3), jnp.float32)

    params = {
        # LayerNorm affine params (torch init is ones/zeros; perturbed here to
        # exercise the affine path) and q_map/k_map weights stored transposed
        # as (in, out) == torch Linear.weight.T; qkv_bias=False -> no biases.
        "ln_q_gamma": 1.0 + 0.1 * jax.random.normal(k3, (C,), jnp.float32),
        "ln_q_beta": 0.02 * jax.random.normal(k4, (C,), jnp.float32),
        "ln_k_gamma": 1.0 + 0.1 * jax.random.normal(k5, (C,), jnp.float32),
        "ln_k_beta": 0.02 * jax.random.normal(k6, (C,), jnp.float32),
        "wq": 0.05 * jax.random.normal(k7, (C, C), jnp.float32),
        "wk": 0.05 * jax.random.normal(k8, (C, C), jnp.float32),
    }

    fwd_pallas = jax.jit(lambda a, b, p: encoder_block_forward(a, b, p, True))
    fwd_ref = jax.jit(lambda a, b, p: encoder_block_forward(a, b, p, False))

    x_out, coor_out = fwd_pallas(x, coor, params)
    x_out = jax.block_until_ready(x_out)
    coor_out = jax.block_until_ready(coor_out)

    x_ref, coor_ref = fwd_ref(x, coor, params)

    assert x_out.shape == (B, 64, C) and coor_out.shape == (B, 64, 3)
    assert jnp.allclose(x_out, x_ref, atol=1e-3, rtol=1e-3), "sample_x mismatch"
    assert jnp.allclose(coor_out, coor_ref, atol=1e-3, rtol=1e-3), "sample_coor mismatch"

    print("KERNEL_OK")
</pallas_src>

<mosaic_0001>
module attributes {stable_mosaic.version = 11 : i64} {
  func.func @kernel(%arg0: i32, %arg1: memref<1x64x256xf32, #tpu.memory_space<vmem>>, %arg2: memref<1x64x256xf32, #tpu.memory_space<vmem>>, %arg3: memref<1x64x128xf32, #tpu.memory_space<vmem>>, %arg4: memref<1x64x128xf32, #tpu.memory_space<vmem>>, %arg5: memref<1x256xf32, #tpu.memory_space<vmem>>, %arg6: memref<1x256xf32, #tpu.memory_space<vmem>>, %arg7: memref<1x256xf32, #tpu.memory_space<vmem>>, %arg8: memref<1x256xf32, #tpu.memory_space<vmem>>, %arg9: memref<256x256xf32, #tpu.memory_space<vmem>>, %arg10: memref<256x256xf32, #tpu.memory_space<vmem>>, %arg11: memref<1x64x256xf32, #tpu.memory_space<vmem>>, %arg12: memref<1x64x128xf32, #tpu.memory_space<vmem>>) attributes {dimension_semantics = [#tpu.dimension_semantics<parallel>], iteration_bounds = array<i64: 2>, scalar_prefetch = 0 : i64, scratch_operands = 0 : i64, tpu.core_type = #tpu.core_type<tc>, window_params = [{transform_indices = @transform_0, window_bounds = array<i64: 1, 64, 256>}, {transform_indices = @transform_1, window_bounds = array<i64: 1, 64, 256>}, {transform_indices = @transform_2, window_bounds = array<i64: 1, 64, 128>}, {transform_indices = @transform_3, window_bounds = array<i64: 1, 64, 128>}, {pipeline_mode = #tpu.pipeline_mode<synchronous>, transform_indices = @transform_4, window_bounds = array<i64: 1, 256>}, {pipeline_mode = #tpu.pipeline_mode<synchronous>, transform_indices = @transform_5, window_bounds = array<i64: 1, 256>}, {pipeline_mode = #tpu.pipeline_mode<synchronous>, transform_indices = @transform_6, window_bounds = array<i64: 1, 256>}, {pipeline_mode = #tpu.pipeline_mode<synchronous>, transform_indices = @transform_7, window_bounds = array<i64: 1, 256>}, {pipeline_mode = #tpu.pipeline_mode<synchronous>, transform_indices = @transform_8, window_bounds = array<i64: 256, 256>}, {pipeline_mode = #tpu.pipeline_mode<synchronous>, transform_indices = @transform_9, window_bounds = array<i64: 256, 256>}, {transform_indices = @transform_10, window_bounds = array<i64: 1, 64, 256>}, {transform_indices = @transform_11, window_bounds = array<i64: 1, 64, 128>}]} {
    %c0 = arith.constant 0 : index
    %c0_0 = arith.constant 0 : index
    %c0_1 = arith.constant 0 : index
    %0 = vector.load %arg1[%c0, %c0_0, %c0_1] : memref<1x64x256xf32, #tpu.memory_space<vmem>>, vector<1x64x256xf32>
    %1 = vector.shape_cast %0 : vector<1x64x256xf32> to vector<64x256xf32>
    %c0_2 = arith.constant 0 : index
    %c0_3 = arith.constant 0 : index
    %c0_4 = arith.constant 0 : index
    %2 = vector.load %arg2[%c0_2, %c0_3, %c0_4] : memref<1x64x256xf32, #tpu.memory_space<vmem>>, vector<1x64x256xf32>
    %3 = vector.shape_cast %2 : vector<1x64x256xf32> to vector<64x256xf32>
    %c0_5 = arith.constant 0 : index
    %c0_6 = arith.constant 0 : index
    %4 = vector.load %arg5[%c0_5, %c0_6] : memref<1x256xf32, #tpu.memory_space<vmem>>, vector<1x256xf32>
    %c0_7 = arith.constant 0 : index
    %c0_8 = arith.constant 0 : index
    %5 = vector.load %arg6[%c0_7, %c0_8] : memref<1x256xf32, #tpu.memory_space<vmem>>, vector<1x256xf32>
    %cst = arith.constant dense<0.000000e+00> : vector<64xf32>
    %6 = vector.multi_reduction <add>, %3, %cst [1] : vector<64x256xf32> to vector<64xf32>
    %7 = vector.shape_cast %6 : vector<64xf32> to vector<64x1xf32>
    %cst_9 = arith.constant 2.560000e+02 : f32
    %8 = vector.broadcast %cst_9 : f32 to vector<64x1xf32>
    %9 = arith.divf %7, %8 : vector<64x1xf32>
    %10 = vector.broadcast %9 : vector<64x1xf32> to vector<64x256xf32>
    %11 = arith.subf %3, %10 : vector<64x256xf32>
    %12 = arith.mulf %11, %11 : vector<64x256xf32>
    %cst_10 = arith.constant dense<0.000000e+00> : vector<64xf32>
    %13 = vector.multi_reduction <add>, %12, %cst_10 [1] : vector<64x256xf32> to vector<64xf32>
    %14 = vector.shape_cast %13 : vector<64xf32> to vector<64x1xf32>
    %cst_11 = arith.constant 2.560000e+02 : f32
    %15 = vector.broadcast %cst_11 : f32 to vector<64x1xf32>
    %16 = arith.divf %14, %15 : vector<64x1xf32>
    %cst_12 = arith.constant 9.99999974E-6 : f32
    %17 = vector.broadcast %cst_12 : f32 to vector<64x1xf32>
    %18 = arith.addf %16, %17 : vector<64x1xf32>
    %19 = math.rsqrt %18 : vector<64x1xf32>
    %20 = vector.broadcast %19 : vector<64x1xf32> to vector<64x256xf32>
    %21 = arith.mulf %11, %20 : vector<64x256xf32>
    %22 = vector.broadcast %4 : vector<1x256xf32> to vector<64x256xf32>
    %23 = arith.mulf %21, %22 : vector<64x256xf32>
    %24 = vector.broadcast %5 : vector<1x256xf32> to vector<64x256xf32>
    %25 = arith.addf %23, %24 : vector<64x256xf32>
    %c0_13 = arith.constant 0 : index
    %c0_14 = arith.constant 0 : index
    %26 = vector.load %arg7[%c0_13, %c0_14] : memref<1x256xf32, #tpu.memory_space<vmem>>, vector<1x256xf32>
    %c0_15 = arith.constant 0 : index
    %c0_16 = arith.constant 0 : index
    %27 = vector.load %arg8[%c0_15, %c0_16] : memref<1x256xf32, #tpu.memory_space<vmem>>, vector<1x256xf32>
    %cst_17 = arith.constant dense<0.000000e+00> : vector<64xf32>
    %28 = vector.multi_reduction <add>, %1, %cst_17 [1] : vector<64x256xf32> to vector<64xf32>
    %29 = vector.shape_cast %28 : vector<64xf32> to vector<64x1xf32>
    %cst_18 = arith.constant 2.560000e+02 : f32
    %30 = vector.broadcast %cst_18 : f32 to vector<64x1xf32>
    %31 = arith.divf %29, %30 : vector<64x1xf32>
    %32 = vector.broadcast %31 : vector<64x1xf32> to vector<64x256xf32>
    %33 = arith.subf %1, %32 : vector<64x256xf32>
    %34 = arith.mulf %33, %33 : vector<64x256xf32>
    %cst_19 = arith.constant dense<0.000000e+00> : vector<64xf32>
    %35 = vector.multi_reduction <add>, %34, %cst_19 [1] : vector<64x256xf32> to vector<64xf32>
    %36 = vector.shape_cast %35 : vector<64xf32> to vector<64x1xf32>
    %cst_20 = arith.constant 2.560000e+02 : f32
    %37 = vector.broadcast %cst_20 : f32 to vector<64x1xf32>
    %38 = arith.divf %36, %37 : vector<64x1xf32>
    %cst_21 = arith.constant 9.99999974E-6 : f32
    %39 = vector.broadcast %cst_21 : f32 to vector<64x1xf32>
    %40 = arith.addf %38, %39 : vector<64x1xf32>
    %41 = math.rsqrt %40 : vector<64x1xf32>
    %42 = vector.broadcast %41 : vector<64x1xf32> to vector<64x256xf32>
    %43 = arith.mulf %33, %42 : vector<64x256xf32>
    %44 = vector.broadcast %26 : vector<1x256xf32> to vector<64x256xf32>
    %45 = arith.mulf %43, %44 : vector<64x256xf32>
    %46 = vector.broadcast %27 : vector<1x256xf32> to vector<64x256xf32>
    %47 = arith.addf %45, %46 : vector<64x256xf32>
    %c0_22 = arith.constant 0 : index
    %c0_23 = arith.constant 0 : index
    %48 = vector.load %arg9[%c0_22, %c0_23] : memref<256x256xf32, #tpu.memory_space<vmem>>, vector<256x256xf32>
    %cst_24 = arith.constant dense<0.000000e+00> : vector<64x256xf32>
    %49 = tpu.matmul %25, %48, %cst_24 {dimension_numbers = #tpu.dot_dimension_numbers<[1], [0], [0], [1], [0, 0, 1, 1], [], []>} : vector<64x256xf32>, vector<256x256xf32>, vector<64x256xf32> -> vector<64x256xf32>
    %c0_25 = arith.constant 0 : index
    %c0_26 = arith.constant 0 : index
    %50 = vector.load %arg10[%c0_25, %c0_26] : memref<256x256xf32, #tpu.memory_space<vmem>>, vector<256x256xf32>
    %cst_27 = arith.constant dense<0.000000e+00> : vector<64x256xf32>
    %51 = tpu.matmul %47, %50, %cst_27 {dimension_numbers = #tpu.dot_dimension_numbers<[1], [0], [0], [1], [0, 0, 1, 1], [], []>} : vector<64x256xf32>, vector<256x256xf32>, vector<64x256xf32> -> vector<64x256xf32>
    %cst_28 = arith.constant dense<0.000000e+00> : vector<64x64xf32>
    %52 = tpu.matmul %49, %51, %cst_28 {dimension_numbers = #tpu.dot_dimension_numbers<[1], [1], [0], [0], [0, 0, 1, 0], [], []>} : vector<64x256xf32>, vector<64x256xf32>, vector<64x64xf32> -> vector<64x64xf32>
    %cst_29 = arith.constant 6.250000e-02 : f32
    %53 = vector.broadcast %cst_29 : f32 to vector<64x64xf32>
    %54 = arith.mulf %52, %53 : vector<64x64xf32>
    %cst_30 = arith.constant dense<0xFF800000> : vector<64xf32>
    %55 = vector.multi_reduction <maximumf>, %54, %cst_30 [1] : vector<64x64xf32> to vector<64xf32>
    %56 = vector.shape_cast %55 : vector<64xf32> to vector<64x1xf32>
    %57 = vector.broadcast %56 : vector<64x1xf32> to vector<64x64xf32>
    %58 = arith.subf %54, %57 : vector<64x64xf32>
    %59 = math.exp %58 : vector<64x64xf32>
    %cst_31 = arith.constant dense<0.000000e+00> : vector<64xf32>
    %60 = vector.multi_reduction <add>, %59, %cst_31 [1] : vector<64x64xf32> to vector<64xf32>
    %61 = vector.shape_cast %60 : vector<64xf32> to vector<64x1xf32>
    %62 = vector.broadcast %61 : vector<64x1xf32> to vector<64x64xf32>
    %63 = arith.divf %59, %62 : vector<64x64xf32>
    %c0_32 = arith.constant 0 : index
    %c0_33 = arith.constant 0 : index
    %c0_34 = arith.constant 0 : index
    %64 = vector.load %arg3[%c0_32, %c0_33, %c0_34] : memref<1x64x128xf32, #tpu.memory_space<vmem>>, vector<1x64x128xf32>
    %65 = vector.shape_cast %64 : vector<1x64x128xf32> to vector<64x128xf32>
    %cst_35 = arith.constant dense<0.000000e+00> : vector<64x128xf32>
    %66 = tpu.matmul %63, %65, %cst_35 {dimension_numbers = #tpu.dot_dimension_numbers<[1], [0], [0], [1], [0, 0, 1, 1], [], []>} : vector<64x64xf32>, vector<64x128xf32>, vector<64x128xf32> -> vector<64x128xf32>
    %67 = arith.addf %1, %3 : vector<64x256xf32>
    %c0_36 = arith.constant 0 : index
    %c0_37 = arith.constant 0 : index
    %c0_38 = arith.constant 0 : index
    %68 = vector.load %arg11[%c0_36, %c0_37, %c0_38] : memref<1x64x256xf32, #tpu.memory_space<vmem>>, vector<1x64x256xf32>
    %69 = vector.shape_cast %68 : vector<1x64x256xf32> to vector<64x256xf32>
    %70 = vector.shape_cast %67 : vector<64x256xf32> to vector<1x64x256xf32>
    tpu.vector_store %arg11[%c0_36, %c0_37, %c0_38], %70 {strides = array<i32>} : memref<1x64x256xf32, #tpu.memory_space<vmem>>, vector<1x64x256xf32>,
    %c0_39 = arith.constant 0 : index
    %c0_40 = arith.constant 0 : index
    %c0_41 = arith.constant 0 : index
    %71 = vector.load %arg4[%c0_39, %c0_40, %c0_41] : memref<1x64x128xf32, #tpu.memory_space<vmem>>, vector<1x64x128xf32>
    %72 = vector.shape_cast %71 : vector<1x64x128xf32> to vector<64x128xf32>
    %73 = arith.addf %72, %66 : vector<64x128xf32>
    %c0_42 = arith.constant 0 : index
    %c0_43 = arith.constant 0 : index
    %c0_44 = arith.constant 0 : index
    %74 = vector.load %arg12[%c0_42, %c0_43, %c0_44] : memref<1x64x128xf32, #tpu.memory_space<vmem>>, vector<1x64x128xf32>
    %75 = vector.shape_cast %74 : vector<1x64x128xf32> to vector<64x128xf32>
    %76 = vector.shape_cast %73 : vector<64x128xf32> to vector<1x64x128xf32>
    tpu.vector_store %arg12[%c0_42, %c0_43, %c0_44], %76 {strides = array<i32>} : memref<1x64x128xf32, #tpu.memory_space<vmem>>, vector<1x64x128xf32>,
    return
  }
  func.func @transform_0(%arg0: i32) -> (i32, i32, i32) {
    %c0_i32 = arith.constant 0 : i32
    %c0_i32_0 = arith.constant 0 : i32
    %c0_i32_1 = arith.constant 0 : i32
    return %arg0, %c0_i32, %c0_i32_0 : i32, i32, i32
  }
  func.func @transform_1(%arg0: i32) -> (i32, i32, i32) {
    %c0_i32 = arith.constant 0 : i32
    %c0_i32_0 = arith.constant 0 : i32
    %c0_i32_1 = arith.constant 0 : i32
    return %arg0, %c0_i32, %c0_i32_0 : i32, i32, i32
  }
  func.func @transform_2(%arg0: i32) -> (i32, i32, i32) {
    %c0_i32 = arith.constant 0 : i32
    %c0_i32_0 = arith.constant 0 : i32
    %c0_i32_1 = arith.constant 0 : i32
    return %arg0, %c0_i32, %c0_i32_0 : i32, i32, i32
  }
  func.func @transform_3(%arg0: i32) -> (i32, i32, i32) {
    %c0_i32 = arith.constant 0 : i32
    %c0_i32_0 = arith.constant 0 : i32
    %c0_i32_1 = arith.constant 0 : i32
    return %arg0, %c0_i32, %c0_i32_0 : i32, i32, i32
  }
  func.func @transform_4(%arg0: i32) -> (i32, i32) {
    %c0_i32 = arith.constant 0 : i32
    %c0_i32_0 = arith.constant 0 : i32
    %c0_i32_1 = arith.constant 0 : i32
    return %c0_i32, %c0_i32_0 : i32, i32
  }
  func.func @transform_5(%arg0: i32) -> (i32, i32) {
    %c0_i32 = arith.constant 0 : i32
    %c0_i32_0 = arith.constant 0 : i32
    %c0_i32_1 = arith.constant 0 : i32
    return %c0_i32, %c0_i32_0 : i32, i32
  }
  func.func @transform_6(%arg0: i32) -> (i32, i32) {
    %c0_i32 = arith.constant 0 : i32
    %c0_i32_0 = arith.constant 0 : i32
    %c0_i32_1 = arith.constant 0 : i32
    return %c0_i32, %c0_i32_0 : i32, i32
  }
  func.func @transform_7(%arg0: i32) -> (i32, i32) {
    %c0_i32 = arith.constant 0 : i32
    %c0_i32_0 = arith.constant 0 : i32
    %c0_i32_1 = arith.constant 0 : i32
    return %c0_i32, %c0_i32_0 : i32, i32
  }
  func.func @transform_8(%arg0: i32) -> (i32, i32) {
    %c0_i32 = arith.constant 0 : i32
    %c0_i32_0 = arith.constant 0 : i32
    %c0_i32_1 = arith.constant 0 : i32
    return %c0_i32, %c0_i32_0 : i32, i32
  }
  func.func @transform_9(%arg0: i32) -> (i32, i32) {
    %c0_i32 = arith.constant 0 : i32
    %c0_i32_0 = arith.constant 0 : i32
    %c0_i32_1 = arith.constant 0 : i32
    return %c0_i32, %c0_i32_0 : i32, i32
  }
  func.func @transform_10(%arg0: i32) -> (i32, i32, i32) {
    %c0_i32 = arith.constant 0 : i32
    %c0_i32_0 = arith.constant 0 : i32
    %c0_i32_1 = arith.constant 0 : i32
    return %arg0, %c0_i32, %c0_i32_0 : i32, i32, i32
  }
  func.func @transform_11(%arg0: i32) -> (i32, i32, i32) {
    %c0_i32 = arith.constant 0 : i32
    %c0_i32_0 = arith.constant 0 : i32
    %c0_i32_1 = arith.constant 0 : i32
    return %arg0, %c0_i32, %c0_i32_0 : i32, i32, i32
  }
}

</mosaic_0001>

<llo_original>
// kernel: custom-call.10
$region0: #{custom-call.10}
  %s0 = inlined_call_operand.vmem [shape: f32[2,128], index: 0, kind: output, shape index: {}]

// kernel: sub.31
$region0: #{sub.31}
  #allocation0 [shape = 's32[1]{0}', space=sflag, size = 0x4, scoped, tag = 'scoped memory for sub.31']
  %s0 = inlined_call_operand.vmem [shape: f32[2,64,256], index: 0, kind: input, shape index: {}]
  %s1 = inlined_call_operand.vmem [shape: f32[2,64,256], index: 1, kind: input, shape index: {}]
  %s2 = inlined_call_operand.vmem [shape: f32[2,64,256], index: 2, kind: output, shape index: {}]
  %v3 = vld [vmem:[%s0] sm:$0xff]
  %v4 = vld [vmem:[%s1] sm:$0xff]
  %5 = xla_tuple %v3, %v4
  %6 = xla_tuple %5
  %v7 = vsub.f32 %v3, %v4
  %8 = xla_tuple %v7
  %9 = vst [vmem:[%s2] sm:$0xff] %v7
  %s10 = scalar_lea.vmem %s0, 128
  %v11 = vld [vmem:[%s10] sm:$0xff]
  %s12 = scalar_lea.vmem %s1, 128
  %v13 = vld [vmem:[%s12] sm:$0xff]
  %14 = xla_tuple %v11, %v13
  %15 = xla_tuple %14
  %v16 = vsub.f32 %v11, %v13
  %17 = xla_tuple %v16
  %s18 = scalar_lea.vmem %s2, 128
  %19 = vst [vmem:[%s18] sm:$0xff] %v16
  %s20 = scalar_lea.vmem %s0, 16
  %v21 = vld [vmem:[%s20] sm:$0xff]
  %s22 = scalar_lea.vmem %s1, 16
  %v23 = vld [vmem:[%s22] sm:$0xff]
  %24 = xla_tuple %v21, %v23
  %25 = xla_tuple %24
  %v26 = vsub.f32 %v21, %v23
  %27 = xla_tuple %v26
  %s28 = scalar_lea.vmem %s2, 16
  %29 = vst [vmem:[%s28] sm:$0xff] %v26
  %s30 = scalar_lea.vmem %s0, 144
  %v31 = vld [vmem:[%s30] sm:$0xff]
  %s32 = scalar_lea.vmem %s1, 144
  %v33 = vld [vmem:[%s32] sm:$0xff]
  %34 = xla_tuple %v31, %v33
  %35 = xla_tuple %34
  %v36 = vsub.f32 %v31, %v33
  %37 = xla_tuple %v36
  %s38 = scalar_lea.vmem %s2, 144
  %39 = vst [vmem:[%s38] sm:$0xff] %v36
  %s40 = scalar_lea.vmem %s0, 32
  %v41 = vld [vmem:[%s40] sm:$0xff]
  %s42 = scalar_lea.vmem %s1, 32
  %v43 = vld [vmem:[%s42] sm:$0xff]
  %44 = xla_tuple %v41, %v43
  %45 = xla_tuple %44
  %v46 = vsub.f32 %v41, %v43
  %47 = xla_tuple %v46
  %s48 = scalar_lea.vmem %s2, 32
  %49 = vst [vmem:[%s48] sm:$0xff] %v46
  %s50 = scalar_lea.vmem %s0, 160
  %v51 = vld [vmem:[%s50] sm:$0xff]
  %s52 = scalar_lea.vmem %s1, 160
  %v53 = vld [vmem:[%s52] sm:$0xff]
  %54 = xla_tuple %v51, %v53
  %55 = xla_tuple %54
  %v56 = vsub.f32 %v51, %v53
  %57 = xla_tuple %v56
  %s58 = scalar_lea.vmem %s2, 160
  %59 = vst [vmem:[%s58] sm:$0xff] %v56
  %s60 = scalar_lea.vmem %s0, 48
  %v61 = vld [vmem:[%s60] sm:$0xff]
  %s62 = scalar_lea.vmem %s1, 48
  %v63 = vld [vmem:[%s62] sm:$0xff]
  %64 = xla_tuple %v61, %v63
  %65 = xla_tuple %64
  %v66 = vsub.f32 %v61, %v63
  %67 = xla_tuple %v66
  %s68 = scalar_lea.vmem %s2, 48
  %69 = vst [vmem:[%s68] sm:$0xff] %v66
  %s70 = scalar_lea.vmem %s0, 176
  %v71 = vld [vmem:[%s70] sm:$0xff]
  %s72 = scalar_lea.vmem %s1, 176
  %v73 = vld [vmem:[%s72] sm:$0xff]
  %74 = xla_tuple %v71, %v73
  %75 = xla_tuple %74
  %v76 = vsub.f32 %v71, %v73
  %77 = xla_tuple %v76
  %s78 = scalar_lea.vmem %s2, 176
  %79 = vst [vmem:[%s78] sm:$0xff] %v76
  %s80 = scalar_lea.vmem %s0, 64
  %v81 = vld [vmem:[%s80] sm:$0xff]
  %s82 = scalar_lea.vmem %s1, 64
  %v83 = vld [vmem:[%s82] sm:$0xff]
  %84 = xla_tuple %v81, %v83
  %85 = xla_tuple %84
  %v86 = vsub.f32 %v81, %v83
  %87 = xla_tuple %v86
  %s88 = scalar_lea.vmem %s2, 64
  %89 = vst [vmem:[%s88] sm:$0xff] %v86
  %s90 = scalar_lea.vmem %s0, 192
  %v91 = vld [vmem:[%s90] sm:$0xff]
  %s92 = scalar_lea.vmem %s1, 192
  %v93 = vld [vmem:[%s92] sm:$0xff]
  %94 = xla_tuple %v91, %v93
  %95 = xla_tuple %94
  %v96 = vsub.f32 %v91, %v93
  %97 = xla_tuple %v96
  %s98 = scalar_lea.vmem %s2, 192
  %99 = vst [vmem:[%s98] sm:$0xff] %v96
  %s100 = scalar_lea.vmem %s0, 80
  %v101 = vld [vmem:[%s100] sm:$0xff]
  %s102 = scalar_lea.vmem %s1, 80
  %v103 = vld [vmem:[%s102] sm:$0xff]
  %104 = xla_tuple %v101, %v103
  %105 = xla_tuple %104
  %v106 = vsub.f32 %v101, %v103
  %107 = xla_tuple %v106
  %s108 = scalar_lea.vmem %s2, 80
  %109 = vst [vmem:[%s108] sm:$0xff] %v106
  %s110 = scalar_lea.vmem %s0, 208
  %v111 = vld [vmem:[%s110] sm:$0xff]
  %s112 = scalar_lea.vmem %s1, 208
  %v113 = vld [vmem:[%s112] sm:$0xff]
  %114 = xla_tuple %v111, %v113
  %115 = xla_tuple %114
  %v116 = vsub.f32 %v111, %v113
  %117 = xla_tuple %v116
  %s118 = scalar_lea.vmem %s2, 208
  %119 = vst [vmem:[%s118] sm:$0xff] %v116
  %s120 = scalar_lea.vmem %s0, 96
  %v121 = vld [vmem:[%s120] sm:$0xff]
  %s122 = scalar_lea.vmem %s1, 96
  %v123 = vld [vmem:[%s122] sm:$0xff]
  %124 = xla_tuple %v121, %v123
  %125 = xla_tuple %124
  %v126 = vsub.f32 %v121, %v123
  %127 = xla_tuple %v126
  %s128 = scalar_lea.vmem %s2, 96
  %129 = vst [vmem:[%s128] sm:$0xff] %v126
  %s130 = scalar_lea.vmem %s0, 224
  %v131 = vld [vmem:[%s130] sm:$0xff]
  %s132 = scalar_lea.vmem %s1, 224
  %v133 = vld [vmem:[%s132] sm:$0xff]
  %134 = xla_tuple %v131, %v133
  %135 = xla_tuple %134
  %v136 = vsub.f32 %v131, %v133
  %137 = xla_tuple %v136
  %s138 = scalar_lea.vmem %s2, 224
  %139 = vst [vmem:[%s138] sm:$0xff] %v136
  %s140 = scalar_lea.vmem %s0, 112
  %v141 = vld [vmem:[%s140] sm:$0xff]
  %s142 = scalar_lea.vmem %s1, 112
  %v143 = vld [vmem:[%s142] sm:$0xff]
  %144 = xla_tuple %v141, %v143
  %145 = xla_tuple %144
  %v146 = vsub.f32 %v141, %v143
  %147 = xla_tuple %v146
  %s148 = scalar_lea.vmem %s2, 112
  %149 = vst [vmem:[%s148] sm:$0xff] %v146
  %s150 = scalar_lea.vmem %s0, 240
  %v151 = vld [vmem:[%s150] sm:$0xff]
  %s152 = scalar_lea.vmem %s1, 240
  %v153 = vld [vmem:[%s152] sm:$0xff]
  %154 = xla_tuple %v151, %v153
  %155 = xla_tuple %154
  %v156 = vsub.f32 %v151, %v153
  %157 = xla_tuple %v156
  %s158 = scalar_lea.vmem %s2, 240
  %159 = vst [vmem:[%s158] sm:$0xff] %v156
  %s160 = scalar_lea.vmem %s0, 8
  %v161 = vld [vmem:[%s160] sm:$0xff]
  %s162 = scalar_lea.vmem %s1, 8
  %v163 = vld [vmem:[%s162] sm:$0xff]
  %164 = xla_tuple %v161, %v163
  %165 = xla_tuple %164
  %v166 = vsub.f32 %v161, %v163
  %167 = xla_tuple %v166
  %s168 = scalar_lea.vmem %s2, 8
  %169 = vst [vmem:[%s168] sm:$0xff] %v166
  %s170 = scalar_lea.vmem %s0, 136
  %v171 = vld [vmem:[%s170] sm:$0xff]
  %s172 = scalar_lea.vmem %s1, 136
  %v173 = vld [vmem:[%s172] sm:$0xff]
  %174 = xla_tuple %v171, %v173
  %175 = xla_tuple %174
  %v176 = vsub.f32 %v171, %v173
  %177 = xla_tuple %v176
  %s178 = scalar_lea.vmem %s2, 136
  %179 = vst [vmem:[%s178] sm:$0xff] %v176
  %s180 = scalar_lea.vmem %s0, 24
  %v181 = vld [vmem:[%s180] sm:$0xff]
  %s182 = scalar_lea.vmem %s1, 24
  %v183 = vld [vmem:[%s182] sm:$0xff]
  %184 = xla_tuple %v181, %v183
  %185 = xla_tuple %184
  %v186 = vsub.f32 %v181, %v183
  %187 = xla_tuple %v186
  %s188 = scalar_lea.vmem %s2, 24
  %189 = vst [vmem:[%s188] sm:$0xff] %v186
  %s190 = scalar_lea.vmem %s0, 152
  %v191 = vld [vmem:[%s190] sm:$0xff]
  %s192 = scalar_lea.vmem %s1, 152
  %v193 = vld [vmem:[%s192] sm:$0xff]
  %194 = xla_tuple %v191, %v193
  %195 = xla_tuple %194
  %v196 = vsub.f32 %v191, %v193
  %197 = xla_tuple %v196
  %s198 = scalar_lea.vmem %s2, 152
  %199 = vst [vmem:[%s198] sm:$0xff] %v196
  %s200 = scalar_lea.vmem %s0, 40
  %v201 = vld [vmem:[%s200] sm:$0xff]
  %s202 = scalar_lea.vmem %s1, 40
  %v203 = vld [vmem:[%s202] sm:$0xff]
  %204 = xla_tuple %v201, %v203
  %205 = xla_tuple %204
  %v206 = vsub.f32 %v201, %v203
  %207 = xla_tuple %v206
  %s208 = scalar_lea.vmem %s2, 40
  %209 = vst [vmem:[%s208] sm:$0xff] %v206
  %s210 = scalar_lea.vmem %s0, 168
  %v211 = vld [vmem:[%s210] sm:$0xff]
  %s212 = scalar_lea.vmem %s1, 168
  %v213 = vld [vmem:[%s212] sm:$0xff]
  %214 = xla_tuple %v211, %v213
  %215 = xla_tuple %214
  %v216 = vsub.f32 %v211, %v213
  %217 = xla_tuple %v216
  %s218 = scalar_lea.vmem %s2, 168
  %219 = vst [vmem:[%s218] sm:$0xff] %v216
  %s220 = scalar_lea.vmem %s0, 56
  %v221 = vld [vmem:[%s220] sm:$0xff]
  %s222 = scalar_lea.vmem %s1, 56
  %v223 = vld [vmem:[%s222] sm:$0xff]
  %224 = xla_tuple %v221, %v223
  %225 = xla_tuple %224
  %v226 = vsub.f32 %v221, %v223
  %227 = xla_tuple %v226
  %s228 = scalar_lea.vmem %s2, 56
  %229 = vst [vmem:[%s228] sm:$0xff] %v226
  %s230 = scalar_lea.vmem %s0, 184
  %v231 = vld [vmem:[%s230] sm:$0xff]
  %s232 = scalar_lea.vmem %s1, 184
  %v233 = vld [vmem:[%s232] sm:$0xff]
  %234 = xla_tuple %v231, %v233
  %235 = xla_tuple %234
  %v236 = vsub.f32 %v231, %v233
  %237 = xla_tuple %v236
  %s238 = scalar_lea.vmem %s2, 184
  %239 = vst [vmem:[%s238] sm:$0xff] %v236
  %s240 = scalar_lea.vmem %s0, 72
  %v241 = vld [vmem:[%s240] sm:$0xff]
  %s242 = scalar_lea.vmem %s1, 72
  %v243 = vld [vmem:[%s242] sm:$0xff]
  %244 = xla_tuple %v241, %v243
  %245 = xla_tuple %244
  %v246 = vsub.f32 %v241, %v243
  %247 = xla_tuple %v246
  %s248 = scalar_lea.vmem %s2, 72
  %249 = vst [vmem:[%s248] sm:$0xff] %v246
  %s250 = scalar_lea.vmem %s0, 200
  %v251 = vld [vmem:[%s250] sm:$0xff]
  %s252 = scalar_lea.vmem %s1, 200
  %v253 = vld [vmem:[%s252] sm:$0xff]
  %254 = xla_tuple %v251, %v253
  %255 = xla_tuple %254
  %v256 = vsub.f32 %v251, %v253
  %257 = xla_tuple %v256
  %s258 = scalar_lea.vmem %s2, 200
  %259 = vst [vmem:[%s258] sm:$0xff] %v256
  %s260 = scalar_lea.vmem %s0, 88
  %v261 = vld [vmem:[%s260] sm:$0xff]
  %s262 = scalar_lea.vmem %s1, 88
  %v263 = vld [vmem:[%s262] sm:$0xff]
  %264 = xla_tuple %v261, %v263
  %265 = xla_tuple %264
  %v266 = vsub.f32 %v261, %v263
  %267 = xla_tuple %v266
  %s268 = scalar_lea.vmem %s2, 88
  %269 = vst [vmem:[%s268] sm:$0xff] %v266
  %s270 = scalar_lea.vmem %s0, 216
  %v271 = vld [vmem:[%s270] sm:$0xff]
  %s272 = scalar_lea.vmem %s1, 216
  %v273 = vld [vmem:[%s272] sm:$0xff]
  %274 = xla_tuple %v271, %v273
  %275 = xla_tuple %274
  %v276 = vsub.f32 %v271, %v273
  %277 = xla_tuple %v276
  %s278 = scalar_lea.vmem %s2, 216
  %279 = vst [vmem:[%s278] sm:$0xff] %v276
  %s280 = scalar_lea.vmem %s0, 104
  %v281 = vld [vmem:[%s280] sm:$0xff]
  %s282 = scalar_lea.vmem %s1, 104
  %v283 = vld [vmem:[%s282] sm:$0xff]
  %284 = xla_tuple %v281, %v283
  %285 = xla_tuple %284
  %v286 = vsub.f32 %v281, %v283
  %287 = xla_tuple %v286
  %s288 = scalar_lea.vmem %s2, 104
  %289 = vst [vmem:[%s288] sm:$0xff] %v286
  %s290 = scalar_lea.vmem %s0, 232
  %v291 = vld [vmem:[%s290] sm:$0xff]
  %s292 = scalar_lea.vmem %s1, 232
  %v293 = vld [vmem:[%s292] sm:$0xff]
  %294 = xla_tuple %v291, %v293
  %295 = xla_tuple %294
  %v296 = vsub.f32 %v291, %v293
  %297 = xla_tuple %v296
  %s298 = scalar_lea.vmem %s2, 232
  %299 = vst [vmem:[%s298] sm:$0xff] %v296
  %s300 = scalar_lea.vmem %s0, 120
  %v301 = vld [vmem:[%s300] sm:$0xff]
  %s302 = scalar_lea.vmem %s1, 120
  %v303 = vld [vmem:[%s302] sm:$0xff]
  %304 = xla_tuple %v301, %v303
  %305 = xla_tuple %304
  %v306 = vsub.f32 %v301, %v303
  %307 = xla_tuple %v306
  %s308 = scalar_lea.vmem %s2, 120
  %309 = vst [vmem:[%s308] sm:$0xff] %v306
  %s310 = scalar_lea.vmem %s0, 248
  %v311 = vld [vmem:[%s310] sm:$0xff]
  %s312 = scalar_lea.vmem %s1, 248
  %v313 = vld [vmem:[%s312] sm:$0xff]
  %314 = xla_tuple %v311, %v313
  %315 = xla_tuple %314
  %v316 = vsub.f32 %v311, %v313
  %317 = xla_tuple %v316
  %s318 = scalar_lea.vmem %s2, 248
  %319 = vst [vmem:[%s318] sm:$0xff] %v316

// kernel: _lambda_.1
$region0: #{_lambda_.1}
  #allocation0 [shape = 'u32[]', space=smem, size = 0x4, offset = 0x4, fixed_abs, tag = 'smem constant byte address 0x4 - core index']
  #allocation1 [shape = 'u32[144,128]{1,0:T(1,128)}', space=vmem, size = 0x12000, scoped, tag = 'internal scratch']
  %s0 = inlined_call_operand.vmem [shape: f32[2,64,256], index: 0, kind: input, shape index: {}]
  %s1 = inlined_call_operand.vmem [shape: f32[2,64,256], index: 1, kind: input, shape index: {}]
  %s2 = inlined_call_operand.vmem [shape: f32[2,64,128], index: 2, kind: input, shape index: {}]
  %s3 = inlined_call_operand.vmem [shape: f32[2,64,128], index: 3, kind: input, shape index: {}]
  %s4 = inlined_call_operand.vmem [shape: f32[1,256], index: 4, kind: input, shape index: {}]
  %s5 = inlined_call_operand.vmem [shape: f32[1,256], index: 5, kind: input, shape index: {}]
  %s6 = inlined_call_operand.vmem [shape: f32[1,256], index: 6, kind: input, shape index: {}]
  %s7 = inlined_call_operand.vmem [shape: f32[1,256], index: 7, kind: input, shape index: {}]
  %s8 = inlined_call_operand.vmem [shape: f32[256,256], index: 8, kind: input, shape index: {}]
  %s9 = inlined_call_operand.vmem [shape: f32[256,256], index: 9, kind: input, shape index: {}]
  %s10 = inlined_call_operand.hbm [shape: f32[2,64,256], index: 10, kind: output, shape index: {0}]
  %s11 = inlined_call_operand.vmem [shape: f32[2,64,128], index: 11, kind: output, shape index: {1}]
  %12 = xla_tuple %s10, %s11
  %s13 = sld [smem:[#allocation0]]
  $region81: #{_lambda_.1} parent=0
    _
  %s15 = ssub.s32 1, %s13
  %s16 = scalar_select 0, %s15, %s13
  $region1: #{_lambda_.1} parent=0
    #allocation2 [shape = 'u8[131072]{0}', space=vmem, size = 0x20000, scoped, tag = 'output window, operand 0']
    #allocation3 [shape = 's32[2]{0}', space=sflag, size = 0x8, scoped, tag = 'scoped memory for _lambda_.1']
    %17 = vsyncpa [#allocation3], 0
    %s18 = scalar_lea.sflag [#allocation3], 1
    %19 = vsyncpa %s18, 0
    loop: start=0, step=1, limit=4
    $region2: #{_lambda_.1} parent=1 // loop_pre_header
      _
    $region3: #{_lambda_.1} parent=1 // loop_header
      %s21 = sphi 0, %s25
      %p22 = scmp.ge.s32.totalorder %s21, 4
      %s31 = sphi 0, %s33
      %s34 = sphi 0, %s31
      %s35 = sphi 0, %s34
      %s51 = sphi 0, %s35
      %s57 = sphi 0, %s59
      %s60 = sphi 0, %s57
      %s61 = sphi 0, %s60
      %s77 = sphi 0, %s61
      %s83 = sphi 0, %s85
      %s86 = sphi 0, %s83
      %s87 = sphi 0, %s86
      %s103 = sphi 0, %s87
      %s109 = sphi 0, %s111
      %s112 = sphi 0, %s109
      %s113 = sphi 0, %s112
      %s129 = sphi 0, %s113
      %s133 = sphi 0, %s133
      %s135 = sphi 0, %s133
      %s136 = sphi 0, %s135
      %s150 = sphi 0, %s136
      %s154 = sphi 0, %s154
      %s156 = sphi 0, %s154
      %s157 = sphi 0, %s156
      %s171 = sphi 0, %s157
      %s175 = sphi 0, %s175
      %s177 = sphi 0, %s175
      %s178 = sphi 0, %s177
      %s192 = sphi 0, %s178
      %s196 = sphi 0, %s196
      %s198 = sphi 0, %s196
      %s199 = sphi 0, %s198
      %s213 = sphi 0, %s199
      %s217 = sphi 0, %s217
      %s219 = sphi 0, %s217
      %s220 = sphi 0, %s219
      %s234 = sphi 0, %s220
      %s238 = sphi 0, %s238
      %s240 = sphi 0, %s238
      %s241 = sphi 0, %s240
      %s255 = sphi 0, %s241
      %s261 = sphi 0, %s263
      %s264 = sphi 0, %s261
      %s265 = sphi 0, %s264
      %s281 = sphi 0, %s265
      %s287 = sphi 0, %s289
      %s290 = sphi 0, %s287
      %s291 = sphi 0, %s290
      %s307 = sphi 0, %s291
    $region4: #{_lambda_.1} parent=1 // loop_header_branch
      %24 = sbr.rel (%p22) target = $region8
    $region5: #{_lambda_.1} parent=1 // loop_body
      %s26 = ssub.s32 %s21, 1
      %s27 = ssub.s32 %s21, 2
      %s28 = sadd.s32 %s21, 1
      %s29 = ssub.s32 %s21, %s28
      %p30 = scmp.eq.s32.totalorder %s29, 0
      %s32 = sadd.s32 %s31, 1
      %s33 = scalar_select %p30, %s31, %s32
      %p36 = pneg %p30
      %p37 = scmp.eq.s32.totalorder %s21, 1
      %p38 = por %p36, %p37
      %p39 = scmp.ne.s32.totalorder %s31, %s34
      %p40 = scmp.eq.s32.totalorder %s21, 0
      %p41 = por %p39, %p40
      %p42 = scmp.ne.s32.totalorder %s31, %s34
      %p43 = scmp.eq.s32.totalorder %s26, 1
      %p44 = por %p42, %p43
      %p45 = scmp.ne.s32.totalorder %s34, %s35
      %p46 = scmp.eq.s32.totalorder %s26, 0
      %p47 = por %p45, %p46
      %p48 = scmp.ne.s32.totalorder %s34, %s35
      %p49 = scmp.eq.s32.totalorder %s27, 1
      %p50 = por %p48, %p49
      %p52 = scmp.ne.s32.totalorder %s35, %s51
      %p53 = scmp.eq.s32.totalorder %s27, 0
      %p54 = por %p52, %p53
      %s55 = ssub.s32 %s21, %s28
      %p56 = scmp.eq.s32.totalorder %s55, 0
      %s58 = sadd.s32 %s57, 1
      %s59 = scalar_select %p56, %s57, %s58
      %p62 = pneg %p56
      %p63 = scmp.eq.s32.totalorder %s21, 1
      %p64 = por %p62, %p63
      %p65 = scmp.ne.s32.totalorder %s57, %s60
      %p66 = scmp.eq.s32.totalorder %s21, 0
      %p67 = por %p65, %p66
      %p68 = scmp.ne.s32.totalorder %s57, %s60
      %p69 = scmp.eq.s32.totalorder %s26, 1
      %p70 = por %p68, %p69
      %p71 = scmp.ne.s32.totalorder %s60, %s61
      %p72 = scmp.eq.s32.totalorder %s26, 0
      %p73 = por %p71, %p72
      %p74 = scmp.ne.s32.totalorder %s60, %s61
      %p75 = scmp.eq.s32.totalorder %s27, 1
      %p76 = por %p74, %p75
      %p78 = scmp.ne.s32.totalorder %s61, %s77
      %p79 = scmp.eq.s32.totalorder %s27, 0
      %p80 = por %p78, %p79
      %s81 = ssub.s32 %s21, %s28
      %p82 = scmp.eq.s32.totalorder %s81, 0
      %s84 = sadd.s32 %s83, 1
      %s85 = scalar_select %p82, %s83, %s84
      %p88 = pneg %p82
      %p89 = scmp.eq.s32.totalorder %s21, 1
      %p90 = por %p88, %p89
      %p91 = scmp.ne.s32.totalorder %s83, %s86
      %p92 = scmp.eq.s32.totalorder %s21, 0
      %p93 = por %p91, %p92
      %p94 = scmp.ne.s32.totalorder %s83, %s86
      %p95 = scmp.eq.s32.totalorder %s26, 1
      %p96 = por %p94, %p95
      %p97 = scmp.ne.s32.totalorder %s86, %s87
      %p98 = scmp.eq.s32.totalorder %s26, 0
      %p99 = por %p97, %p98
      %p100 = scmp.ne.s32.totalorder %s86, %s87
      %p101 = scmp.eq.s32.totalorder %s27, 1
      %p102 = por %p100, %p101
      %p104 = scmp.ne.s32.totalorder %s87, %s103
      %p105 = scmp.eq.s32.totalorder %s27, 0
      %p106 = por %p104, %p105
      %s107 = ssub.s32 %s21, %s28
      %p108 = scmp.eq.s32.totalorder %s107, 0
      %s110 = sadd.s32 %s109, 1
      %s111 = scalar_select %p108, %s109, %s110
      %p114 = pneg %p108
      %p115 = scmp.eq.s32.totalorder %s21, 1
      %p116 = por %p114, %p115
      %p117 = scmp.ne.s32.totalorder %s109, %s112
      %p118 = scmp.eq.s32.totalorder %s21, 0
      %p119 = por %p117, %p118
      %p120 = scmp.ne.s32.totalorder %s109, %s112
      %p121 = scmp.eq.s32.totalorder %s26, 1
      %p122 = por %p120, %p121
      %p123 = scmp.ne.s32.totalorder %s112, %s113
      %p124 = scmp.eq.s32.totalorder %s26, 0
      %p125 = por %p123, %p124
      %p126 = scmp.ne.s32.totalorder %s112, %s113
      %p127 = scmp.eq.s32.totalorder %s27, 1
      %p128 = por %p126, %p127
      %p130 = scmp.ne.s32.totalorder %s113, %s129
      %p131 = scmp.eq.s32.totalorder %s27, 0
      %p132 = por %p130, %p131
      %s134 = sadd.s32 %s133, 1
      %p137 = scmp.eq.s32.totalorder %s21, 1
      %p138 = scmp.ne.s32.totalorder %s133, %s135
      %p139 = scmp.eq.s32.totalorder %s21, 0
      %p140 = por %p138, %p139
      %p141 = scmp.ne.s32.totalorder %s133, %s135
      %p142 = scmp.eq.s32.totalorder %s26, 1
      %p143 = por %p141, %p142
      %p144 = scmp.ne.s32.totalorder %s135, %s136
      %p145 = scmp.eq.s32.totalorder %s26, 0
      %p146 = por %p144, %p145
      %p147 = scmp.ne.s32.totalorder %s135, %s136
      %p148 = scmp.eq.s32.totalorder %s27, 1
      %p149 = por %p147, %p148
      %p151 = scmp.ne.s32.totalorder %s136, %s150
      %p152 = scmp.eq.s32.totalorder %s27, 0
      %p153 = por %p151, %p152
      %s155 = sadd.s32 %s154, 1
      %p158 = scmp.eq.s32.totalorder %s21, 1
      %p159 = scmp.ne.s32.totalorder %s154, %s156
      %p160 = scmp.eq.s32.totalorder %s21, 0
      %p161 = por %p159, %p160
      %p162 = scmp.ne.s32.totalorder %s154, %s156
      %p163 = scmp.eq.s32.totalorder %s26, 1
      %p164 = por %p162, %p163
      %p165 = scmp.ne.s32.totalorder %s156, %s157
      %p166 = scmp.eq.s32.totalorder %s26, 0
      %p167 = por %p165, %p166
      %p168 = scmp.ne.s32.totalorder %s156, %s157
      %p169 = scmp.eq.s32.totalorder %s27, 1
      %p170 = por %p168, %p169
      %p172 = scmp.ne.s32.totalorder %s157, %s171
      %p173 = scmp.eq.s32.totalorder %s27, 0
      %p174 = por %p172, %p173
      %s176 = sadd.s32 %s175, 1
      %p179 = scmp.eq.s32.totalorder %s21, 1
      %p180 = scmp.ne.s32.totalorder %s175, %s177
      %p181 = scmp.eq.s32.totalorder %s21, 0
      %p182 = por %p180, %p181
      %p183 = scmp.ne.s32.totalorder %s175, %s177
      %p184 = scmp.eq.s32.totalorder %s26, 1
      %p185 = por %p183, %p184
      %p186 = scmp.ne.s32.totalorder %s177, %s178
      %p187 = scmp.eq.s32.totalorder %s26, 0
      %p188 = por %p186, %p187
      %p189 = scmp.ne.s32.totalorder %s177, %s178
      %p190 = scmp.eq.s32.totalorder %s27, 1
      %p191 = por %p189, %p190
      %p193 = scmp.ne.s32.totalorder %s178, %s192
      %p194 = scmp.eq.s32.totalorder %s27, 0
      %p195 = por %p193, %p194
      %s197 = sadd.s32 %s196, 1
      %p200 = scmp.eq.s32.totalorder %s21, 1
      %p201 = scmp.ne.s32.totalorder %s196, %s198
      %p202 = scmp.eq.s32.totalorder %s21, 0
      %p203 = por %p201, %p202
      %p204 = scmp.ne.s32.totalorder %s196, %s198
      %p205 = scmp.eq.s32.totalorder %s26, 1
      %p206 = por %p204, %p205
      %p207 = scmp.ne.s32.totalorder %s198, %s199
      %p208 = scmp.eq.s32.totalorder %s26, 0
      %p209 = por %p207, %p208
      %p210 = scmp.ne.s32.totalorder %s198, %s199
      %p211 = scmp.eq.s32.totalorder %s27, 1
      %p212 = por %p210, %p211
      %p214 = scmp.ne.s32.totalorder %s199, %s213
      %p215 = scmp.eq.s32.totalorder %s27, 0
      %p216 = por %p214, %p215
      %s218 = sadd.s32 %s217, 1
      %p221 = scmp.eq.s32.totalorder %s21, 1
      %p222 = scmp.ne.s32.totalorder %s217, %s219
      %p223 = scmp.eq.s32.totalorder %s21, 0
      %p224 = por %p222, %p223
      %p225 = scmp.ne.s32.totalorder %s217, %s219
      %p226 = scmp.eq.s32.totalorder %s26, 1
      %p227 = por %p225, %p226
      %p228 = scmp.ne.s32.totalorder %s219, %s220
      %p229 = scmp.eq.s32.totalorder %s26, 0
      %p230 = por %p228, %p229
      %p231 = scmp.ne.s32.totalorder %s219, %s220
      %p232 = scmp.eq.s32.totalorder %s27, 1
      %p233 = por %p231, %p232
      %p235 = scmp.ne.s32.totalorder %s220, %s234
      %p236 = scmp.eq.s32.totalorder %s27, 0
      %p237 = por %p235, %p236
      %s239 = sadd.s32 %s238, 1
      %p242 = scmp.eq.s32.totalorder %s21, 1
      %p243 = scmp.ne.s32.totalorder %s238, %s240
      %p244 = scmp.eq.s32.totalorder %s21, 0
      %p245 = por %p243, %p244
      %p246 = scmp.ne.s32.totalorder %s238, %s240
      %p247 = scmp.eq.s32.totalorder %s26, 1
      %p248 = por %p246, %p247
      %p249 = scmp.ne.s32.totalorder %s240, %s241
      %p250 = scmp.eq.s32.totalorder %s26, 0
      %p251 = por %p249, %p250
      %p252 = scmp.ne.s32.totalorder %s240, %s241
      %p253 = scmp.eq.s32.totalorder %s27, 1
      %p254 = por %p252, %p253
      %p256 = scmp.ne.s32.totalorder %s241, %s255
      %p257 = scmp.eq.s32.totalorder %s27, 0
      %p258 = por %p256, %p257
      %s259 = ssub.s32 %s21, %s28
      %p260 = scmp.eq.s32.totalorder %s259, 0
      %s262 = sadd.s32 %s261, 1
      %s263 = scalar_select %p260, %s261, %s262
      %p266 = pneg %p260
      %p267 = scmp.eq.s32.totalorder %s21, 1
      %p268 = por %p266, %p267
      %p269 = scmp.ne.s32.totalorder %s261, %s264
      %p270 = scmp.eq.s32.totalorder %s21, 0
      %p271 = por %p269, %p270
      %p272 = scmp.ne.s32.totalorder %s261, %s264
      %p273 = scmp.eq.s32.totalorder %s26, 1
      %p274 = por %p272, %p273
      %p275 = scmp.ne.s32.totalorder %s264, %s265
      %p276 = scmp.eq.s32.totalorder %s26, 0
      %p277 = por %p275, %p276
      %p278 = scmp.ne.s32.totalorder %s264, %s265
      %p279 = scmp.eq.s32.totalorder %s27, 1
      %p280 = por %p278, %p279
      %p282 = scmp.ne.s32.totalorder %s265, %s281
      %p283 = scmp.eq.s32.totalorder %s27, 0
      %p284 = por %p282, %p283
      %s285 = ssub.s32 %s21, %s28
      %p286 = scmp.eq.s32.totalorder %s285, 0
      %s288 = sadd.s32 %s287, 1
      %s289 = scalar_select %p286, %s287, %s288
      %p292 = pneg %p286
      %p293 = scmp.eq.s32.totalorder %s21, 1
      %p294 = por %p292, %p293
      %p295 = scmp.ne.s32.totalorder %s287, %s290
      %p296 = scmp.eq.s32.totalorder %s21, 0
      %p297 = por %p295, %p296
      %p298 = scmp.ne.s32.totalorder %s287, %s290
      %p299 = scmp.eq.s32.totalorder %s26, 1
      %p300 = por %p298, %p299
      %p301 = scmp.ne.s32.totalorder %s290, %s291
      %p302 = scmp.eq.s32.totalorder %s26, 0
      %p303 = por %p301, %p302
      %p304 = scmp.ne.s32.totalorder %s290, %s291
      %p305 = scmp.eq.s32.totalorder %s27, 1
      %p306 = por %p304, %p305
      %p308 = scmp.ne.s32.totalorder %s291, %s307
      %p309 = scmp.eq.s32.totalorder %s27, 0
      %p310 = por %p308, %p309
      %p311 = scmp.le.s32.totalorder 1, %s21
      %p312 = scmp.lt.s32.totalorder %s21, 3
      %p313 = pnand %p311, %p312
      %p314 = pneg %p313
      // Predicated region
      $region9: #{_lambda_.1} parent=5 // pred_check
        _
      $region10: #{_lambda_.1} parent=5 // pred_check_branch
        %316 = sbr.rel (%p313) target = $region12
      $region11: #{_lambda_.1} parent=5 // pred_region
        %s317 = ssub.s32 %s21, 1
        // Predicated region
        $region13: #{_lambda_.1} parent=11 // pred_check
          %p318 = pneg %p146
        $region14: #{_lambda_.1} parent=11 // pred_check_branch
          %320 = sbr.rel (%p318) target = $region16
        $region15: #{_lambda_.1} parent=11 // pred_region
          _
        $region16: #{_lambda_.1} parent=11 // pred_fallthru
          _
        // Predicated region
        $region17: #{_lambda_.1} parent=11 // pred_check
          %p321 = pneg %p167
        $region18: #{_lambda_.1} parent=11 // pred_check_branch
          %323 = sbr.rel (%p321) target = $region20
        $region19: #{_lambda_.1} parent=11 // pred_region
          _
        $region20: #{_lambda_.1} parent=11 // pred_fallthru
          _
        // Predicated region
        $region21: #{_lambda_.1} parent=11 // pred_check
          %p324 = pneg %p188
        $region22: #{_lambda_.1} parent=11 // pred_check_branch
          %326 = sbr.rel (%p324) target = $region24
        $region23: #{_lambda_.1} parent=11 // pred_region
          _
        $region24: #{_lambda_.1} parent=11 // pred_fallthru
          _
        // Predicated region
        $region25: #{_lambda_.1} parent=11 // pred_check
          %p327 = pneg %p209
        $region26: #{_lambda_.1} parent=11 // pred_check_branch
          %329 = sbr.rel (%p327) target = $region28
        $region27: #{_lambda_.1} parent=11 // pred_region
          _
        $region28: #{_lambda_.1} parent=11 // pred_fallthru
          _
        // Predicated region
        $region29: #{_lambda_.1} parent=11 // pred_check
          %p330 = pneg %p230
        $region30: #{_lambda_.1} parent=11 // pred_check_branch
          %332 = sbr.rel (%p330) target = $region32
        $region31: #{_lambda_.1} parent=11 // pred_region
          _
        $region32: #{_lambda_.1} parent=11 // pred_fallthru
          _
        // Predicated region
        $region33: #{_lambda_.1} parent=11 // pred_check
          %p333 = pneg %p251
        $region34: #{_lambda_.1} parent=11 // pred_check_branch
          %335 = sbr.rel (%p333) target = $region36
        $region35: #{_lambda_.1} parent=11 // pred_region
          _
        $region36: #{_lambda_.1} parent=11 // pred_fallthru
          _
      $region12: #{_lambda_.1} parent=5 // pred_fallthru
        _
      %p336 = scmp.lt.s32.totalorder %s21, 2
      // Predicated region
      $region37: #{_lambda_.1} parent=5 // pred_check
        %p337 = pneg %p336
      $region38: #{_lambda_.1} parent=5 // pred_check_branch
        %339 = sbr.rel (%p337) target = $region40
      $region39: #{_lambda_.1} parent=5 // pred_region
        // Predicated region
        $region41: #{_lambda_.1} parent=39 // pred_check
          %p340 = pneg %p41
        $region42: #{_lambda_.1} parent=39 // pred_check_branch
          %342 = sbr.rel (%p340) target = $region44
        $region43: #{_lambda_.1} parent=39 // pred_region
          %p343 = scmp.lt.s32.totalorder %s21, 1
          %s344 = scalar_select %p343, %s21, 1
          %s345 = smul.addr %s344, 16
          %s346 = smul.addr %s345, 8
          %s347 = scalar_lea.vmem %s0, %s346
        $region44: #{_lambda_.1} parent=39 // pred_fallthru
          _
        // Predicated region
        $region45: #{_lambda_.1} parent=39 // pred_check
          %p348 = pneg %p67
        $region46: #{_lambda_.1} parent=39 // pred_check_branch
          %350 = sbr.rel (%p348) target = $region48
        $region47: #{_lambda_.1} parent=39 // pred_region
          %p351 = scmp.lt.s32.totalorder %s21, 1
          %s352 = scalar_select %p351, %s21, 1
          %s353 = smul.addr %s352, 16
          %s354 = smul.addr %s353, 8
          %s355 = scalar_lea.vmem %s1, %s354
        $region48: #{_lambda_.1} parent=39 // pred_fallthru
          _
        // Predicated region
        $region49: #{_lambda_.1} parent=39 // pred_check
          %p356 = pneg %p93
        $region50: #{_lambda_.1} parent=39 // pred_check_branch
          %358 = sbr.rel (%p356) target = $region52
        $region51: #{_lambda_.1} parent=39 // pred_region
          %p359 = scmp.lt.s32.totalorder %s21, 1
          %s360 = scalar_select %p359, %s21, 1
          %s361 = smul.addr %s360, 8
          %s362 = smul.addr %s361, 8
          %s363 = scalar_lea.vmem %s2, %s362
        $region52: #{_lambda_.1} parent=39 // pred_fallthru
          _
        // Predicated region
        $region53: #{_lambda_.1} parent=39 // pred_check
          %p364 = pneg %p119
        $region54: #{_lambda_.1} parent=39 // pred_check_branch
          %366 = sbr.rel (%p364) target = $region56
        $region55: #{_lambda_.1} parent=39 // pred_region
          %p367 = scmp.lt.s32.totalorder %s21, 1
          %s368 = scalar_select %p367, %s21, 1
          %s369 = smul.addr %s368, 8
          %s370 = smul.addr %s369, 8
          %s371 = scalar_lea.vmem %s3, %s370
        $region56: #{_lambda_.1} parent=39 // pred_fallthru
          _
      $region40: #{_lambda_.1} parent=5 // pred_fallthru
        _
      %p372 = scmp.le.s32.totalorder 1, %s21
      %p373 = scmp.lt.s32.totalorder %s21, 3
      %p374 = pnand %p372, %p373
      %p375 = pneg %p374
      // Predicated region
      $region57: #{_lambda_.1} parent=5 // pred_check
        _
      $region58: #{_lambda_.1} parent=5 // pred_check_branch
        %377 = sbr.rel (%p374) target = $region60
      $region59: #{_lambda_.1} parent=5 // pred_region
        %s378 = ssub.s32 %s21, 1
        %p379 = scmp.lt.s32.totalorder %s26, 1
        %s380 = scalar_select %p379, %s26, 1
        %s381 = smul.addr %s380, 16
        %s382 = smul.addr %s381, 8
        %s383 = scalar_lea.vmem %s0, %s382
        %p384 = pneg %p47
        %p385 = pneg %p44
        %p386 = scmp.lt.s32.totalorder %s26, 1
        %s387 = scalar_select %p386, %s26, 1
        %s388 = smul.addr %s387, 16
        %s389 = smul.addr %s388, 8
        %s390 = scalar_lea.vmem %s1, %s389
        %p391 = pneg %p73
        %p392 = pneg %p70
        %p393 = scmp.lt.s32.totalorder %s26, 1
        %s394 = scalar_select %p393, %s26, 1
        %s395 = smul.addr %s394, 8
        %s396 = smul.addr %s395, 8
        %s397 = scalar_lea.vmem %s2, %s396
        %p398 = pneg %p99
        %p399 = pneg %p96
        %p400 = scmp.lt.s32.totalorder %s26, 1
        %s401 = scalar_select %p400, %s26, 1
        %s402 = smul.addr %s401, 8
        %s403 = smul.addr %s402, 8
        %s404 = scalar_lea.vmem %s3, %s403
        %p405 = pneg %p125
        %p406 = pneg %p122
        %p407 = pneg %p146
        %p408 = pneg %p143
        %p409 = pneg %p167
        %p410 = pneg %p164
        %p411 = pneg %p188
        %p412 = pneg %p185
        %p413 = pneg %p209
        %p414 = pneg %p206
        %p415 = pneg %p230
        %p416 = pneg %p227
        %p417 = pneg %p251
        %p418 = pneg %p248
        %p419 = pneg %p277
        %p420 = pneg %p274
        %s421 = sand.u32 %s264, 1
        %s422 = scalar_lea.sflag [#allocation3], %s421
        %s423 = sand.u32 %s264, 1
        %s424 = smul.addr %s423, 128
        %s425 = scalar_lea.vmem [#allocation2], %s424
        %p426 = pneg %p303
        %p427 = pneg %p300
        %p428 = scmp.lt.s32.totalorder %s26, 1
        %s429 = scalar_select %p428, %s26, 1
        %s430 = smul.addr %s429, 8
        %s431 = smul.addr %s430, 8
        %s432 = scalar_lea.vmem %s11, %s431
        %p433 = scmp.lt.s32.totalorder %s26, 1
        %s434 = scalar_select %p433, %s26, 1
        %s435 = smul.addr %s434, 16
        %s436 = smul.addr %s435, 8
        %s437 = scalar_lea.vmem %s0, %s436
        %p438 = scmp.lt.s32.totalorder %s26, 1
        %s439 = scalar_select %p438, %s26, 1
        %s440 = smul.addr %s439, 16
        %s441 = smul.addr %s440, 8
        %s442 = scalar_lea.vmem %s1, %s441
        %p443 = scmp.lt.s32.totalorder %s26, 1
        %s444 = scalar_select %p443, %s26, 1
        %s445 = smul.addr %s444, 8
        %s446 = smul.addr %s445, 8
        %s447 = scalar_lea.vmem %s2, %s446
        %p448 = scmp.lt.s32.totalorder %s26, 1
        %s449 = scalar_select %p448, %s26, 1
        %s450 = smul.addr %s449, 8
        %s451 = smul.addr %s450, 8
        %s452 = scalar_lea.vmem %s3, %s451
        %p453 = scmp.lt.s32.totalorder %s26, 1
        %s454 = scalar_select %p453, %s26, 1
        %s455 = smul.addr %s454, 8
        %s456 = smul.addr %s455, 8
        %s457 = scalar_lea.vmem %s11, %s456
        %v458 = vld [vmem:[%s437] sm:$0xff]
        %v459 = vld [vmem:[%s437 + $0x8] sm:$0xff]
        %v460 = vld [vmem:[%s437 + $0x10] sm:$0xff]
        %v461 = vld [vmem:[%s437 + $0x18] sm:$0xff]
        %v462 = vld [vmem:[%s437 + $0x20] sm:$0xff]
        %v463 = vld [vmem:[%s437 + $0x28] sm:$0xff]
        %v464 = vld [vmem:[%s437 + $0x30] sm:$0xff]
        %v465 = vld [vmem:[%s437 + $0x38] sm:$0xff]
        %v466 = vld [vmem:[%s437 + $0x40] sm:$0xff]
        %v467 = vld [vmem:[%s437 + $0x48] sm:$0xff]
        %v468 = vld [vmem:[%s437 + $0x50] sm:$0xff]
        %v469 = vld [vmem:[%s437 + $0x58] sm:$0xff]
        %v470 = vld [vmem:[%s437 + $0x60] sm:$0xff]
        %v471 = vld [vmem:[%s437 + $0x68] sm:$0xff]
        %v472 = vld [vmem:[%s437 + $0x70] sm:$0xff]
        %v473 = vld [vmem:[%s437 + $0x78] sm:$0xff]
        %v474 = vld [vmem:[%s442] sm:$0xff]
        %v475 = vld [vmem:[%s442 + $0x8] sm:$0xff]
        %v476 = vld [vmem:[%s442 + $0x10] sm:$0xff]
        %v477 = vld [vmem:[%s442 + $0x18] sm:$0xff]
        %v478 = vld [vmem:[%s442 + $0x20] sm:$0xff]
        %v479 = vld [vmem:[%s442 + $0x28] sm:$0xff]
        %v480 = vld [vmem:[%s442 + $0x30] sm:$0xff]
        %v481 = vld [vmem:[%s442 + $0x38] sm:$0xff]
        %v482 = vld [vmem:[%s442 + $0x40] sm:$0xff]
        %v483 = vld [vmem:[%s442 + $0x48] sm:$0xff]
        %v484 = vld [vmem:[%s442 + $0x50] sm:$0xff]
        %v485 = vld [vmem:[%s442 + $0x58] sm:$0xff]
        %v486 = vld [vmem:[%s442 + $0x60] sm:$0xff]
        %v487 = vld [vmem:[%s442 + $0x68] sm:$0xff]
        %v488 = vld [vmem:[%s442 + $0x70] sm:$0xff]
        %v489 = vld [vmem:[%s442 + $0x78] sm:$0xff]
        %v490 = vld [vmem:[%s4] sm:$0x3]
        %v491 = vld [vmem:[%s5] sm:$0x3]
        %v492 = vadd.f32 %v474, %v475
        %493 = vadd.xlane.f32.xlu0 %v492
        %v494 = vpop.xlane.xlu0 %493
        %v495 = vadd.f32 %v476, %v477
        %496 = vadd.xlane.f32.xlu0 %v495
        %v497 = vpop.xlane.xlu0 %496
        %v498 = vadd.f32 %v478, %v479
        %499 = vadd.xlane.f32.xlu0 %v498
        %v500 = vpop.xlane.xlu0 %499
        %v501 = vadd.f32 %v480, %v481
        %502 = vadd.xlane.f32.xlu0 %v501
        %v503 = vpop.xlane.xlu0 %502
        %v504 = vadd.f32 %v482, %v483
        %505 = vadd.xlane.f32.xlu0 %v504
        %v506 = vpop.xlane.xlu0 %505
        %v507 = vadd.f32 %v484, %v485
        %508 = vadd.xlane.f32.xlu0 %v507
        %v509 = vpop.xlane.xlu0 %508
        %v510 = vadd.f32 %v486, %v487
        %511 = vadd.xlane.f32.xlu0 %v510
        %v512 = vpop.xlane.xlu0 %511
        %v513 = vadd.f32 %v488, %v489
        %514 = vadd.xlane.f32.xlu0 %v513
        %v515 = vpop.xlane.xlu0 %514
        %v516 = vrcp.pop 256.0
        %v517 = vmul.f32 %v494, %v516
        %v518 = vmul.f32 %v497, %v516
        %v519 = vmul.f32 %v500, %v516
        %v520 = vmul.f32 %v503, %v516
        %v521 = vmul.f32 %v506, %v516
        %v522 = vmul.f32 %v509, %v516
        %v523 = vmul.f32 %v512, %v516
        %v524 = vmul.f32 %v515, %v516
        %v525 = vsub.f32 %v474, %v517
        %v526 = vsub.f32 %v475, %v517
        %v527 = vsub.f32 %v476, %v518
        %v528 = vsub.f32 %v477, %v518
        %v529 = vsub.f32 %v478, %v519
        %v530 = vsub.f32 %v479, %v519
        %v531 = vsub.f32 %v480, %v520
        %v532 = vsub.f32 %v481, %v520
        %v533 = vsub.f32 %v482, %v521
        %v534 = vsub.f32 %v483, %v521
        %v535 = vsub.f32 %v484, %v522
        %v536 = vsub.f32 %v485, %v522
        %v537 = vsub.f32 %v486, %v523
        %v538 = vsub.f32 %v487, %v523
        %v539 = vsub.f32 %v488, %v524
        %v540 = vsub.f32 %v489, %v524
        %v541 = vmul.f32 %v525, %v525
        %v542 = vmul.f32 %v526, %v526
        %v543 = vmul.f32 %v527, %v527
        %v544 = vmul.f32 %v528, %v528
        %v545 = vmul.f32 %v529, %v529
        %v546 = vmul.f32 %v530, %v530
        %v547 = vmul.f32 %v531, %v531
        %v548 = vmul.f32 %v532, %v532
        %v549 = vmul.f32 %v533, %v533
        %v550 = vmul.f32 %v534, %v534
        %v551 = vmul.f32 %v535, %v535
        %v552 = vmul.f32 %v536, %v536
        %v553 = vmul.f32 %v537, %v537
        %v554 = vmul.f32 %v538, %v538
        %v555 = vmul.f32 %v539, %v539
        %v556 = vmul.f32 %v540, %v540
        %v557 = vadd.f32 %v541, %v542
        %558 = vadd.xlane.f32.xlu0 %v557
        %v559 = vpop.xlane.xlu0 %558
        %v560 = vadd.f32 %v543, %v544
        %561 = vadd.xlane.f32.xlu0 %v560
        %v562 = vpop.xlane.xlu0 %561
        %v563 = vadd.f32 %v545, %v546
        %564 = vadd.xlane.f32.xlu0 %v563
        %v565 = vpop.xlane.xlu0 %564
        %v566 = vadd.f32 %v547, %v548
        %567 = vadd.xlane.f32.xlu0 %v566
        %v568 = vpop.xlane.xlu0 %567
        %v569 = vadd.f32 %v549, %v550
        %570 = vadd.xlane.f32.xlu0 %v569
        %v571 = vpop.xlane.xlu0 %570
        %v572 = vadd.f32 %v551, %v552
        %573 = vadd.xlane.f32.xlu0 %v572
        %v574 = vpop.xlane.xlu0 %573
        %v575 = vadd.f32 %v553, %v554
        %576 = vadd.xlane.f32.xlu0 %v575
        %v577 = vpop.xlane.xlu0 %576
        %v578 = vadd.f32 %v555, %v556
        %579 = vadd.xlane.f32.xlu0 %v578
        %v580 = vpop.xlane.xlu0 %579
        %v581 = vmul.f32 %v559, %v516
        %v582 = vmul.f32 %v562, %v516
        %v583 = vmul.f32 %v565, %v516
        %v584 = vmul.f32 %v568, %v516
        %v585 = vmul.f32 %v571, %v516
        %v586 = vmul.f32 %v574, %v516
        %v587 = vmul.f32 %v577, %v516
        %v588 = vmul.f32 %v580, %v516
        %v589 = vadd.f32 %v581, 1e-05
        %v590 = vadd.f32 %v582, 1e-05
        %v591 = vadd.f32 %v583, 1e-05
        %v592 = vadd.f32 %v584, 1e-05
        %v593 = vadd.f32 %v585, 1e-05
        %v594 = vadd.f32 %v586, 1e-05
        %v595 = vadd.f32 %v587, 1e-05
        %v596 = vadd.f32 %v588, 1e-05
        %v597 = vrsqrt.pop %v589
        %v598 = vrsqrt.pop %v590
        %v599 = vrsqrt.pop %v591
        %v600 = vrsqrt.pop %v592
        %v601 = vrsqrt.pop %v593
        %v602 = vrsqrt.pop %v594
        %v603 = vrsqrt.pop %v595
        %v604 = vrsqrt.pop %v596
        %v605 = vmul.f32 %v525, %v597
        %v606 = vmul.f32 %v526, %v597
        %v607 = vmul.f32 %v527, %v598
        %v608 = vmul.f32 %v528, %v598
        %v609 = vmul.f32 %v529, %v599
        %v610 = vmul.f32 %v530, %v599
        %v611 = vmul.f32 %v531, %v600
        %v612 = vmul.f32 %v532, %v600
        %v613 = vmul.f32 %v533, %v601
        %v614 = vmul.f32 %v534, %v601
        %v615 = vmul.f32 %v535, %v602
        %v616 = vmul.f32 %v536, %v602
        %v617 = vmul.f32 %v537, %v603
        %v618 = vmul.f32 %v538, %v603
        %v619 = vmul.f32 %v539, %v604
        %v620 = vmul.f32 %v540, %v604
        %v622 = vlaneseq
        %v623 = vshrl.u32 %v622, 7
        %v624 = vsub.s32 0, %v623
        %v625 = vrot.slane %v490, %v624
        %v626 = vlaneseq
        %v627 = vshrl.u32 %v626, 7
        %v628 = vsub.s32 1, %v627
        %v629 = vrot.slane %v490, %v628
        %v632 = vmul.f32 %v605, %v625
        %v633 = vmul.f32 %v606, %v629
        %v634 = vmul.f32 %v607, %v625
        %v635 = vmul.f32 %v608, %v629
        %v636 = vmul.f32 %v609, %v625
        %v637 = vmul.f32 %v610, %v629
        %v638 = vmul.f32 %v611, %v625
        %v639 = vmul.f32 %v612, %v629
        %v640 = vmul.f32 %v613, %v625
        %v641 = vmul.f32 %v614, %v629
        %v642 = vmul.f32 %v615, %v625
        %v643 = vmul.f32 %v616, %v629
        %v644 = vmul.f32 %v617, %v625
        %v645 = vmul.f32 %v618, %v629
        %v646 = vmul.f32 %v619, %v625
        %v647 = vmul.f32 %v620, %v629
        %v649 = vlaneseq
        %v650 = vshrl.u32 %v649, 7
        %v651 = vsub.s32 0, %v650
        %v652 = vrot.slane %v491, %v651
        %v653 = vlaneseq
        %v654 = vshrl.u32 %v653, 7
        %v655 = vsub.s32 1, %v654
        %v656 = vrot.slane %v491, %v655
        %v659 = vadd.f32 %v632, %v652
        %v660 = vadd.f32 %v633, %v656
        %v661 = vadd.f32 %v634, %v652
        %v662 = vadd.f32 %v635, %v656
        %v663 = vadd.f32 %v636, %v652
        %v664 = vadd.f32 %v637, %v656
        %v665 = vadd.f32 %v638, %v652
        %v666 = vadd.f32 %v639, %v656
        %v667 = vadd.f32 %v640, %v652
        %v668 = vadd.f32 %v641, %v656
        %v669 = vadd.f32 %v642, %v652
        %v670 = vadd.f32 %v643, %v656
        %v671 = vadd.f32 %v644, %v652
        %v672 = vadd.f32 %v645, %v656
        %v673 = vadd.f32 %v646, %v652
        %v674 = vadd.f32 %v647, %v656
        %v675 = vld [vmem:[%s6] sm:$0x3]
        %v676 = vld [vmem:[%s7] sm:$0x3]
        %v677 = vadd.f32 %v458, %v459
        %678 = vadd.xlane.f32.xlu0 %v677
        %v679 = vpop.xlane.xlu0 %678
        %v680 = vadd.f32 %v460, %v461
        %681 = vadd.xlane.f32.xlu0 %v680
        %v682 = vpop.xlane.xlu0 %681
        %v683 = vadd.f32 %v462, %v463
        %684 = vadd.xlane.f32.xlu0 %v683
        %v685 = vpop.xlane.xlu0 %684
        %v686 = vadd.f32 %v464, %v465
        %687 = vadd.xlane.f32.xlu0 %v686
        %v688 = vpop.xlane.xlu0 %687
        %v689 = vadd.f32 %v466, %v467
        %690 = vadd.xlane.f32.xlu0 %v689
        %v691 = vpop.xlane.xlu0 %690
        %v692 = vadd.f32 %v468, %v469
        %693 = vadd.xlane.f32.xlu0 %v692
        %v694 = vpop.xlane.xlu0 %693
        %v695 = vadd.f32 %v470, %v471
        %696 = vadd.xlane.f32.xlu0 %v695
        %v697 = vpop.xlane.xlu0 %696
        %v698 = vadd.f32 %v472, %v473
        %699 = vadd.xlane.f32.xlu0 %v698
        %v700 = vpop.xlane.xlu0 %699
        %v701 = vmul.f32 %v679, %v516
        %v702 = vmul.f32 %v682, %v516
        %v703 = vmul.f32 %v685, %v516
        %v704 = vmul.f32 %v688, %v516
        %v705 = vmul.f32 %v691, %v516
        %v706 = vmul.f32 %v694, %v516
        %v707 = vmul.f32 %v697, %v516
        %v708 = vmul.f32 %v700, %v516
        %v709 = vsub.f32 %v458, %v701
        %v710 = vsub.f32 %v459, %v701
        %v711 = vsub.f32 %v460, %v702
        %v712 = vsub.f32 %v461, %v702
        %v713 = vsub.f32 %v462, %v703
        %v714 = vsub.f32 %v463, %v703
        %v715 = vsub.f32 %v464, %v704
        %v716 = vsub.f32 %v465, %v704
        %v717 = vsub.f32 %v466, %v705
        %v718 = vsub.f32 %v467, %v705
        %v719 = vsub.f32 %v468, %v706
        %v720 = vsub.f32 %v469, %v706
        %v721 = vsub.f32 %v470, %v707
        %v722 = vsub.f32 %v471, %v707
        %v723 = vsub.f32 %v472, %v708
        %v724 = vsub.f32 %v473, %v708
        %v725 = vmul.f32 %v709, %v709
        %v726 = vmul.f32 %v710, %v710
        %v727 = vmul.f32 %v711, %v711
        %v728 = vmul.f32 %v712, %v712
        %v729 = vmul.f32 %v713, %v713
        %v730 = vmul.f32 %v714, %v714
        %v731 = vmul.f32 %v715, %v715
        %v732 = vmul.f32 %v716, %v716
        %v733 = vmul.f32 %v717, %v717
        %v734 = vmul.f32 %v718, %v718
        %v735 = vmul.f32 %v719, %v719
        %v736 = vmul.f32 %v720, %v720
        %v737 = vmul.f32 %v721, %v721
        %v738 = vmul.f32 %v722, %v722
        %v739 = vmul.f32 %v723, %v723
        %v740 = vmul.f32 %v724, %v724
        %v741 = vadd.f32 %v725, %v726
        %742 = vadd.xlane.f32.xlu0 %v741
        %v743 = vpop.xlane.xlu0 %742
        %v744 = vadd.f32 %v727, %v728
        %745 = vadd.xlane.f32.xlu0 %v744
        %v746 = vpop.xlane.xlu0 %745
        %v747 = vadd.f32 %v729, %v730
        %748 = vadd.xlane.f32.xlu0 %v747
        %v749 = vpop.xlane.xlu0 %748
        %v750 = vadd.f32 %v731, %v732
        %751 = vadd.xlane.f32.xlu0 %v750
        %v752 = vpop.xlane.xlu0 %751
        %v753 = vadd.f32 %v733, %v734
        %754 = vadd.xlane.f32.xlu0 %v753
        %v755 = vpop.xlane.xlu0 %754
        %v756 = vadd.f32 %v735, %v736
        %757 = vadd.xlane.f32.xlu0 %v756
        %v758 = vpop.xlane.xlu0 %757
        %v759 = vadd.f32 %v737, %v738
        %760 = vadd.xlane.f32.xlu0 %v759
        %v761 = vpop.xlane.xlu0 %760
        %v762 = vadd.f32 %v739, %v740
        %763 = vadd.xlane.f32.xlu0 %v762
        %v764 = vpop.xlane.xlu0 %763
        %v765 = vmul.f32 %v743, %v516
        %v766 = vmul.f32 %v746, %v516
        %v767 = vmul.f32 %v749, %v516
        %v768 = vmul.f32 %v752, %v516
        %v769 = vmul.f32 %v755, %v516
        %v770 = vmul.f32 %v758, %v516
        %v771 = vmul.f32 %v761, %v516
        %v772 = vmul.f32 %v764, %v516
        %v773 = vadd.f32 %v765, 1e-05
        %v774 = vadd.f32 %v766, 1e-05
        %v775 = vadd.f32 %v767, 1e-05
        %v776 = vadd.f32 %v768, 1e-05
        %v777 = vadd.f32 %v769, 1e-05
        %v778 = vadd.f32 %v770, 1e-05
        %v779 = vadd.f32 %v771, 1e-05
        %v780 = vadd.f32 %v772, 1e-05
        %v781 = vrsqrt.pop %v773
        %v782 = vrsqrt.pop %v774
        %v783 = vrsqrt.pop %v775
        %v784 = vrsqrt.pop %v776
        %v785 = vrsqrt.pop %v777
        %v786 = vrsqrt.pop %v778
        %v787 = vrsqrt.pop %v779
        %v788 = vrsqrt.pop %v780
        %v789 = vmul.f32 %v709, %v781
        %v790 = vmul.f32 %v710, %v781
        %v791 = vmul.f32 %v711, %v782
        %v792 = vmul.f32 %v712, %v782
        %v793 = vmul.f32 %v713, %v783
        %v794 = vmul.f32 %v714, %v783
        %v795 = vmul.f32 %v715, %v784
        %v796 = vmul.f32 %v716, %v784
        %v797 = vmul.f32 %v717, %v785
        %v798 = vmul.f32 %v718, %v785
        %v799 = vmul.f32 %v719, %v786
        %v800 = vmul.f32 %v720, %v786
        %v801 = vmul.f32 %v721, %v787
        %v802 = vmul.f32 %v722, %v787
        %v803 = vmul.f32 %v723, %v788
        %v804 = vmul.f32 %v724, %v788
        %v806 = vlaneseq
        %v807 = vshrl.u32 %v806, 7
        %v808 = vsub.s32 0, %v807
        %v809 = vrot.slane %v675, %v808
        %v810 = vlaneseq
        %v811 = vshrl.u32 %v810, 7
        %v812 = vsub.s32 1, %v811
        %v813 = vrot.slane %v675, %v812
        %v816 = vmul.f32 %v789, %v809
        %v817 = vmul.f32 %v790, %v813
        %v818 = vmul.f32 %v791, %v809
        %v819 = vmul.f32 %v792, %v813
        %v820 = vmul.f32 %v793, %v809
        %v821 = vmul.f32 %v794, %v813
        %v822 = vmul.f32 %v795, %v809
        %v823 = vmul.f32 %v796, %v813
        %v824 = vmul.f32 %v797, %v809
        %v825 = vmul.f32 %v798, %v813
        %v826 = vmul.f32 %v799, %v809
        %v827 = vmul.f32 %v800, %v813
        %v828 = vmul.f32 %v801, %v809
        %v829 = vmul.f32 %v802, %v813
        %v830 = vmul.f32 %v803, %v809
        %v831 = vmul.f32 %v804, %v813
        %v833 = vlaneseq
        %v834 = vshrl.u32 %v833, 7
        %v835 = vsub.s32 0, %v834
        %v836 = vrot.slane %v676, %v835
        %v837 = vlaneseq
        %v838 = vshrl.u32 %v837, 7
        %v839 = vsub.s32 1, %v838
        %v840 = vrot.slane %v676, %v839
        %v843 = vadd.f32 %v816, %v836
        %v844 = vadd.f32 %v817, %v840
        %v845 = vadd.f32 %v818, %v836
        %v846 = vadd.f32 %v819, %v840
        %v847 = vadd.f32 %v820, %v836
        %v848 = vadd.f32 %v821, %v840
        %v849 = vadd.f32 %v822, %v836
        %v850 = vadd.f32 %v823, %v840
        %v851 = vadd.f32 %v824, %v836
        %v852 = vadd.f32 %v825, %v840
        %v853 = vadd.f32 %v826, %v836
        %v854 = vadd.f32 %v827, %v840
        %v855 = vadd.f32 %v828, %v836
        %v856 = vadd.f32 %v829, %v840
        %v857 = vadd.f32 %v830, %v836
        %v858 = vadd.f32 %v831, %v840
        %v859 = vld [vmem:[%s8] sm:$0xff]
        %v860 = vld [vmem:[%s8 + $0x8] sm:$0xff]
        %v861 = vld [vmem:[%s8 + $0x10] sm:$0xff]
        %v862 = vld [vmem:[%s8 + $0x18] sm:$0xff]
        %v863 = vld [vmem:[%s8 + $0x20] sm:$0xff]
        %v864 = vld [vmem:[%s8 + $0x28] sm:$0xff]
        %v865 = vld [vmem:[%s8 + $0x30] sm:$0xff]
        %v866 = vld [vmem:[%s8 + $0x38] sm:$0xff]
        %v867 = vld [vmem:[%s8 + $0x40] sm:$0xff]
        %v868 = vld [vmem:[%s8 + $0x48] sm:$0xff]
        %v869 = vld [vmem:[%s8 + $0x50] sm:$0xff]
        %v870 = vld [vmem:[%s8 + $0x58] sm:$0xff]
        %v871 = vld [vmem:[%s8 + $0x60] sm:$0xff]
        %v872 = vld [vmem:[%s8 + $0x68] sm:$0xff]
        %v873 = vld [vmem:[%s8 + $0x70] sm:$0xff]
        %v874 = vld [vmem:[%s8 + $0x78] sm:$0xff]
        %v875 = vld [vmem:[%s8 + $0x80] sm:$0xff]
        %v876 = vld [vmem:[%s8 + $0x88] sm:$0xff]
        %v877 = vld [vmem:[%s8 + $0x90] sm:$0xff]
        %v878 = vld [vmem:[%s8 + $0x98] sm:$0xff]
        %v879 = vld [vmem:[%s8 + $0xa0] sm:$0xff]
        %v880 = vld [vmem:[%s8 + $0xa8] sm:$0xff]
        %v881 = vld [vmem:[%s8 + $0xb0] sm:$0xff]
        %v882 = vld [vmem:[%s8 + $0xb8] sm:$0xff]
        %v883 = vld [vmem:[%s8 + $0xc0] sm:$0xff]
        %v884 = vld [vmem:[%s8 + $0xc8] sm:$0xff]
        %v885 = vld [vmem:[%s8 + $0xd0] sm:$0xff]
        %v886 = vld [vmem:[%s8 + $0xd8] sm:$0xff]
        %v887 = vld [vmem:[%s8 + $0xe0] sm:$0xff]
        %v888 = vld [vmem:[%s8 + $0xe8] sm:$0xff]
        %v889 = vld [vmem:[%s8 + $0xf0] sm:$0xff]
        %v890 = vld [vmem:[%s8 + $0xf8] sm:$0xff]
        %v891 = vld [vmem:[%s8 + $0x100] sm:$0xff]
        %v892 = vld [vmem:[%s8 + $0x108] sm:$0xff]
        %v893 = vld [vmem:[%s8 + $0x110] sm:$0xff]
        %v894 = vld [vmem:[%s8 + $0x118] sm:$0xff]
        %v895 = vld [vmem:[%s8 + $0x120] sm:$0xff]
        %v896 = vld [vmem:[%s8 + $0x128] sm:$0xff]
        %v897 = vld [vmem:[%s8 + $0x130] sm:$0xff]
        %v898 = vld [vmem:[%s8 + $0x138] sm:$0xff]
        %v899 = vld [vmem:[%s8 + $0x140] sm:$0xff]
        %v900 = vld [vmem:[%s8 + $0x148] sm:$0xff]
        %v901 = vld [vmem:[%s8 + $0x150] sm:$0xff]
        %v902 = vld [vmem:[%s8 + $0x158] sm:$0xff]
        %v903 = vld [vmem:[%s8 + $0x160] sm:$0xff]
        %v904 = vld [vmem:[%s8 + $0x168] sm:$0xff]
        %v905 = vld [vmem:[%s8 + $0x170] sm:$0xff]
        %v906 = vld [vmem:[%s8 + $0x178] sm:$0xff]
        %v907 = vld [vmem:[%s8 + $0x180] sm:$0xff]
        %v908 = vld [vmem:[%s8 + $0x188] sm:$0xff]
        %v909 = vld [vmem:[%s8 + $0x190] sm:$0xff]
        %v910 = vld [vmem:[%s8 + $0x198] sm:$0xff]
        %v911 = vld [vmem:[%s8 + $0x1a0] sm:$0xff]
        %v912 = vld [vmem:[%s8 + $0x1a8] sm:$0xff]
        %v913 = vld [vmem:[%s8 + $0x1b0] sm:$0xff]
        %v914 = vld [vmem:[%s8 + $0x1b8] sm:$0xff]
        %v915 = vld [vmem:[%s8 + $0x1c0] sm:$0xff]
        %v916 = vld [vmem:[%s8 + $0x1c8] sm:$0xff]
        %v917 = vld [vmem:[%s8 + $0x1d0] sm:$0xff]
        %v918 = vld [vmem:[%s8 + $0x1d8] sm:$0xff]
        %v919 = vld [vmem:[%s8 + $0x1e0] sm:$0xff]
        %v920 = vld [vmem:[%s8 + $0x1e8] sm:$0xff]
        %v921 = vld [vmem:[%s8 + $0x1f0] sm:$0xff]
        %v922 = vld [vmem:[%s8 + $0x1f8] sm:$0xff]
        %923 = vmatprep.subr.mxu0 %v860
        %924 = vmatpush1.msra.mxu0 %v859
        %925 = vmatprep.subr.mxu0 %v862
        %926 = vmatpush1.msra.mxu0 %v861
        %927 = vmatprep.subr.mxu0 %v864
        %928 = vmatpush1.msra.mxu0 %v863
        %929 = vmatprep.subr.mxu0 %v866
        %930 = vmatpush1.msra.mxu0 %v865
        %931 = vmatprep.subr.mxu0 %v868
        %932 = vmatpush1.msra.mxu0 %v867
        %933 = vmatprep.subr.mxu0 %v870
        %934 = vmatpush1.msra.mxu0 %v869
        %935 = vmatprep.subr.mxu0 %v872
        %936 = vmatpush1.msra.mxu0 %v871
        %937 = vmatprep.subr.mxu0 %v874
        %938 = vmatpush1.msra.mxu0 %v873
        %939 = vmatprep.subr.mxu0 %v876
        %940 = vmatpush1.msra.mxu0 %v875
        %941 = vmatprep.subr.mxu0 %v878
        %942 = vmatpush1.msra.mxu0 %v877
        %943 = vmatprep.subr.mxu0 %v880
        %944 = vmatpush1.msra.mxu0 %v879
        %945 = vmatprep.subr.mxu0 %v882
        %946 = vmatpush1.msra.mxu0 %v881
        %947 = vmatprep.subr.mxu0 %v884
        %948 = vmatpush1.msra.mxu0 %v883
        %949 = vmatprep.subr.mxu0 %v886
        %950 = vmatpush1.msra.mxu0 %v885
        %951 = vmatprep.subr.mxu0 %v888
        %952 = vmatpush1.msra.mxu0 %v887
        %953 = vmatprep.subr.mxu0 %v890
        %954 = vmatpush1.msra.mxu0 %v889
        %955 = vmatprep.subr.mxu0 %v892
        %956 = vmatpush1.msra.mxu0 %v891
        %957 = vmatprep.subr.mxu0 %v894
        %958 = vmatpush1.msra.mxu0 %v893
        %959 = vmatprep.subr.mxu0 %v896
        %960 = vmatpush1.msra.mxu0 %v895
        %961 = vmatprep.subr.mxu0 %v898
        %962 = vmatpush1.msra.mxu0 %v897
        %963 = vmatprep.subr.mxu0 %v900
        %964 = vmatpush1.msra.mxu0 %v899
        %965 = vmatprep.subr.mxu0 %v902
        %966 = vmatpush1.msra.mxu0 %v901
        %967 = vmatprep.subr.mxu0 %v904
        %968 = vmatpush1.msra.mxu0 %v903
        %969 = vmatprep.subr.mxu0 %v906
        %970 = vmatpush1.msra.mxu0 %v905
        %971 = vmatprep.subr.mxu0 %v908
        %972 = vmatpush1.msra.mxu0 %v907
        %973 = vmatprep.subr.mxu0 %v910
        %974 = vmatpush1.msra.mxu0 %v909
        %975 = vmatprep.subr.mxu0 %v912
        %976 = vmatpush1.msra.mxu0 %v911
        %977 = vmatprep.subr.mxu0 %v914
        %978 = vmatpush1.msra.mxu0 %v913
        %979 = vmatprep.subr.mxu0 %v916
        %980 = vmatpush1.msra.mxu0 %v915
        %981 = vmatprep.subr.mxu0 %v918
        %982 = vmatpush1.msra.mxu0 %v917
        %983 = vmatprep.subr.mxu0 %v920
        %984 = vmatpush1.msra.mxu0 %v919
        %985 = vmatprep.subr.mxu0 %v922
        %986 = vmatpush1.msra.mxu0 %v921
        %987 = vmatprep.mubr.f32.mxu0 %v660
        %988 = vmatmul.mubr.f32.gmra.mrb[0].mxu0 %v659
        %v989 = vpop.f32.mrb[0].mxu0
        %v990 = vadd.f32 0.0, %v989
        %v991 = vpop.f32.mrb[0].mxu0
        %v992 = vadd.f32 0.0, %v991
        %993 = vmatprep.mubr.f32.mxu0 %v662
        %994 = vmatmul.mubr.f32.gmra.mrb[0].mxu0 %v661
        %v995 = vpop.f32.mrb[0].mxu0
        %v996 = vadd.f32 0.0, %v995
        %v997 = vpop.f32.mrb[0].mxu0
        %v998 = vadd.f32 0.0, %v997
        %999 = vmatprep.mubr.f32.mxu0 %v664
        %1000 = vmatmul.mubr.f32.gmra.mrb[0].mxu0 %v663
        %v1001 = vpop.f32.mrb[0].mxu0
        %v1002 = vadd.f32 0.0, %v1001
        %v1003 = vpop.f32.mrb[0].mxu0
        %v1004 = vadd.f32 0.0, %v1003
        %1005 = vmatprep.mubr.f32.mxu0 %v666
        %1006 = vmatmul.mubr.f32.gmra.mrb[0].mxu0 %v665
        %v1007 = vpop.f32.mrb[0].mxu0
        %v1008 = vadd.f32 0.0, %v1007
        %v1009 = vpop.f32.mrb[0].mxu0
        %v1010 = vadd.f32 0.0, %v1009
        %1011 = vmatprep.mubr.f32.mxu0 %v668
        %1012 = vmatmul.mubr.f32.gmra.mrb[0].mxu0 %v667
        %v1013 = vpop.f32.mrb[0].mxu0
        %v1014 = vadd.f32 0.0, %v1013
        %v1015 = vpop.f32.mrb[0].mxu0
        %v1016 = vadd.f32 0.0, %v1015
        %1017 = vmatprep.mubr.f32.mxu0 %v670
        %1018 = vmatmul.mubr.f32.gmra.mrb[0].mxu0 %v669
        %v1019 = vpop.f32.mrb[0].mxu0
        %v1020 = vadd.f32 0.0, %v1019
        %v1021 = vpop.f32.mrb[0].mxu0
        %v1022 = vadd.f32 0.0, %v1021
        %1023 = vmatprep.mubr.f32.mxu0 %v672
        %1024 = vmatmul.mubr.f32.gmra.mrb[0].mxu0 %v671
        %v1025 = vpop.f32.mrb[0].mxu0
        %v1026 = vadd.f32 0.0, %v1025
        %v1027 = vpop.f32.mrb[0].mxu0
        %v1028 = vadd.f32 0.0, %v1027
        %1029 = vmatprep.mubr.f32.mxu0 %v674
        %1030 = vmatmul.mubr.f32.gmra.mrb[0].mxu0 %v673
        %v1031 = vpop.f32.mrb[0].mxu0
        %v1032 = vadd.f32 0.0, %v1031
        %v1033 = vpop.f32.mrb[0].mxu0
        %v1034 = vadd.f32 0.0, %v1033
        %1035 = vdwg.mxu0
        %v1036 = vld [vmem:[%s9] sm:$0xff]
        %v1037 = vld [vmem:[%s9 + $0x8] sm:$0xff]
        %v1038 = vld [vmem:[%s9 + $0x10] sm:$0xff]
        %v1039 = vld [vmem:[%s9 + $0x18] sm:$0xff]
        %v1040 = vld [vmem:[%s9 + $0x20] sm:$0xff]
        %v1041 = vld [vmem:[%s9 + $0x28] sm:$0xff]
        %v1042 = vld [vmem:[%s9 + $0x30] sm:$0xff]
        %v1043 = vld [vmem:[%s9 + $0x38] sm:$0xff]
        %v1044 = vld [vmem:[%s9 + $0x40] sm:$0xff]
        %v1045 = vld [vmem:[%s9 + $0x48] sm:$0xff]
        %v1046 = vld [vmem:[%s9 + $0x50] sm:$0xff]
        %v1047 = vld [vmem:[%s9 + $0x58] sm:$0xff]
        %v1048 = vld [vmem:[%s9 + $0x60] sm:$0xff]
        %v1049 = vld [vmem:[%s9 + $0x68] sm:$0xff]
        %v1050 = vld [vmem:[%s9 + $0x70] sm:$0xff]
        %v1051 = vld [vmem:[%s9 + $0x78] sm:$0xff]
        %v1052 = vld [vmem:[%s9 + $0x80] sm:$0xff]
        %v1053 = vld [vmem:[%s9 + $0x88] sm:$0xff]
        %v1054 = vld [vmem:[%s9 + $0x90] sm:$0xff]
        %v1055 = vld [vmem:[%s9 + $0x98] sm:$0xff]
        %v1056 = vld [vmem:[%s9 + $0xa0] sm:$0xff]
        %v1057 = vld [vmem:[%s9 + $0xa8] sm:$0xff]
        %v1058 = vld [vmem:[%s9 + $0xb0] sm:$0xff]
        %v1059 = vld [vmem:[%s9 + $0xb8] sm:$0xff]
        %v1060 = vld [vmem:[%s9 + $0xc0] sm:$0xff]
        %v1061 = vld [vmem:[%s9 + $0xc8] sm:$0xff]
        %v1062 = vld [vmem:[%s9 + $0xd0] sm:$0xff]
        %v1063 = vld [vmem:[%s9 + $0xd8] sm:$0xff]
        %v1064 = vld [vmem:[%s9 + $0xe0] sm:$0xff]
        %v1065 = vld [vmem:[%s9 + $0xe8] sm:$0xff]
        %v1066 = vld [vmem:[%s9 + $0xf0] sm:$0xff]
        %v1067 = vld [vmem:[%s9 + $0xf8] sm:$0xff]
        %v1068 = vld [vmem:[%s9 + $0x100] sm:$0xff]
        %v1069 = vld [vmem:[%s9 + $0x108] sm:$0xff]
        %v1070 = vld [vmem:[%s9 + $0x110] sm:$0xff]
        %v1071 = vld [vmem:[%s9 + $0x118] sm:$0xff]
        %v1072 = vld [vmem:[%s9 + $0x120] sm:$0xff]
        %v1073 = vld [vmem:[%s9 + $0x128] sm:$0xff]
        %v1074 = vld [vmem:[%s9 + $0x130] sm:$0xff]
        %v1075 = vld [vmem:[%s9 + $0x138] sm:$0xff]
        %v1076 = vld [vmem:[%s9 + $0x140] sm:$0xff]
        %v1077 = vld [vmem:[%s9 + $0x148] sm:$0xff]
        %v1078 = vld [vmem:[%s9 + $0x150] sm:$0xff]
        %v1079 = vld [vmem:[%s9 + $0x158] sm:$0xff]
        %v1080 = vld [vmem:[%s9 + $0x160] sm:$0xff]
        %v1081 = vld [vmem:[%s9 + $0x168] sm:$0xff]
        %v1082 = vld [vmem:[%s9 + $0x170] sm:$0xff]
        %v1083 = vld [vmem:[%s9 + $0x178] sm:$0xff]
        %v1084 = vld [vmem:[%s9 + $0x180] sm:$0xff]
        %v1085 = vld [vmem:[%s9 + $0x188] sm:$0xff]
        %v1086 = vld [vmem:[%s9 + $0x190] sm:$0xff]
        %v1087 = vld [vmem:[%s9 + $0x198] sm:$0xff]
        %v1088 = vld [vmem:[%s9 + $0x1a0] sm:$0xff]
        %v1089 = vld [vmem:[%s9 + $0x1a8] sm:$0xff]
        %v1090 = vld [vmem:[%s9 + $0x1b0] sm:$0xff]
        %v1091 = vld [vmem:[%s9 + $0x1b8] sm:$0xff]
        %v1092 = vld [vmem:[%s9 + $0x1c0] sm:$0xff]
        %v1093 = vld [vmem:[%s9 + $0x1c8] sm:$0xff]
        %v1094 = vld [vmem:[%s9 + $0x1d0] sm:$0xff]
        %v1095 = vld [vmem:[%s9 + $0x1d8] sm:$0xff]
        %v1096 = vld [vmem:[%s9 + $0x1e0] sm:$0xff]
        %v1097 = vld [vmem:[%s9 + $0x1e8] sm:$0xff]
        %v1098 = vld [vmem:[%s9 + $0x1f0] sm:$0xff]
        %v1099 = vld [vmem:[%s9 + $0x1f8] sm:$0xff]
        %1100 = vmatprep.subr.mxu0 %v1037
        %1101 = vmatpush1.msra.mxu0 %v1036
        %1102 = vmatprep.subr.mxu0 %v1039
        %1103 = vmatpush1.msra.mxu0 %v1038
        %1104 = vmatprep.subr.mxu0 %v1041
        %1105 = vmatpush1.msra.mxu0 %v1040
        %1106 = vmatprep.subr.mxu0 %v1043
        %1107 = vmatpush1.msra.mxu0 %v1042
        %1108 = vmatprep.subr.mxu0 %v1045
        %1109 = vmatpush1.msra.mxu0 %v1044
        %1110 = vmatprep.subr.mxu0 %v1047
        %1111 = vmatpush1.msra.mxu0 %v1046
        %1112 = vmatprep.subr.mxu0 %v1049
        %1113 = vmatpush1.msra.mxu0 %v1048
        %1114 = vmatprep.subr.mxu0 %v1051
        %1115 = vmatpush1.msra.mxu0 %v1050
        %1116 = vmatprep.subr.mxu0 %v1053
        %1117 = vmatpush1.msra.mxu0 %v1052
        %1118 = vmatprep.subr.mxu0 %v1055
        %1119 = vmatpush1.msra.mxu0 %v1054
        %1120 = vmatprep.subr.mxu0 %v1057
        %1121 = vmatpush1.msra.mxu0 %v1056
        %1122 = vmatprep.subr.mxu0 %v1059
        %1123 = vmatpush1.msra.mxu0 %v1058
        %1124 = vmatprep.subr.mxu0 %v1061
        %1125 = vmatpush1.msra.mxu0 %v1060
        %1126 = vmatprep.subr.mxu0 %v1063
        %1127 = vmatpush1.msra.mxu0 %v1062
        %1128 = vmatprep.subr.mxu0 %v1065
        %1129 = vmatpush1.msra.mxu0 %v1064
        %1130 = vmatprep.subr.mxu0 %v1067
        %1131 = vmatpush1.msra.mxu0 %v1066
        %1132 = vmatprep.subr.mxu0 %v1069
        %1133 = vmatpush1.msra.mxu0 %v1068
        %1134 = vmatprep.subr.mxu0 %v1071
        %1135 = vmatpush1.msra.mxu0 %v1070
        %1136 = vmatprep.subr.mxu0 %v1073
        %1137 = vmatpush1.msra.mxu0 %v1072
        %1138 = vmatprep.subr.mxu0 %v1075
        %1139 = vmatpush1.msra.mxu0 %v1074
        %1140 = vmatprep.subr.mxu0 %v1077
        %1141 = vmatpush1.msra.mxu0 %v1076
        %1142 = vmatprep.subr.mxu0 %v1079
        %1143 = vmatpush1.msra.mxu0 %v1078
        %1144 = vmatprep.subr.mxu0 %v1081
        %1145 = vmatpush1.msra.mxu0 %v1080
        %1146 = vmatprep.subr.mxu0 %v1083
        %1147 = vmatpush1.msra.mxu0 %v1082
        %1148 = vmatprep.subr.mxu0 %v1085
        %1149 = vmatpush1.msra.mxu0 %v1084
        %1150 = vmatprep.subr.mxu0 %v1087
        %1151 = vmatpush1.msra.mxu0 %v1086
        %1152 = vmatprep.subr.mxu0 %v1089
        %1153 = vmatpush1.msra.mxu0 %v1088
        %1154 = vmatprep.subr.mxu0 %v1091
        %1155 = vmatpush1.msra.mxu0 %v1090
        %1156 = vmatprep.subr.mxu0 %v1093
        %1157 = vmatpush1.msra.mxu0 %v1092
        %1158 = vmatprep.subr.mxu0 %v1095
        %1159 = vmatpush1.msra.mxu0 %v1094
        %1160 = vmatprep.subr.mxu0 %v1097
        %1161 = vmatpush1.msra.mxu0 %v1096
        %1162 = vmatprep.subr.mxu0 %v1099
        %1163 = vmatpush1.msra.mxu0 %v1098
        %1164 = vmatprep.mubr.f32.mxu0 %v844
        %1165 = vmatmul.mubr.f32.gmra.mrb[0].mxu0 %v843
        %v1166 = vpop.f32.mrb[0].mxu0
        %v1167 = vadd.f32 0.0, %v1166
        %v1168 = vpop.f32.mrb[0].mxu0
        %v1169 = vadd.f32 0.0, %v1168
        %1170 = vmatprep.mubr.f32.mxu0 %v846
        %1171 = vmatmul.mubr.f32.gmra.mrb[0].mxu0 %v845
        %v1172 = vpop.f32.mrb[0].mxu0
        %v1173 = vadd.f32 0.0, %v1172
        %v1174 = vpop.f32.mrb[0].mxu0
        %v1175 = vadd.f32 0.0, %v1174
        %1176 = vmatprep.mubr.f32.mxu0 %v848
        %1177 = vmatmul.mubr.f32.gmra.mrb[0].mxu0 %v847
        %v1178 = vpop.f32.mrb[0].mxu0
        %v1179 = vadd.f32 0.0, %v1178
        %v1180 = vpop.f32.mrb[0].mxu0
        %v1181 = vadd.f32 0.0, %v1180
        %1182 = vmatprep.mubr.f32.mxu0 %v850
        %1183 = vmatmul.mubr.f32.gmra.mrb[0].mxu0 %v849
        %v1184 = vpop.f32.mrb[0].mxu0
        %v1185 = vadd.f32 0.0, %v1184
        %v1186 = vpop.f32.mrb[0].mxu0
        %v1187 = vadd.f32 0.0, %v1186
        %1188 = vmatprep.mubr.f32.mxu0 %v852
        %1189 = vmatmul.mubr.f32.gmra.mrb[0].mxu0 %v851
        %v1190 = vpop.f32.mrb[0].mxu0
        %v1191 = vadd.f32 0.0, %v1190
        %v1192 = vpop.f32.mrb[0].mxu0
        %v1193 = vadd.f32 0.0, %v1192
        %1194 = vmatprep.mubr.f32.mxu0 %v854
        %1195 = vmatmul.mubr.f32.gmra.mrb[0].mxu0 %v853
        %v1196 = vpop.f32.mrb[0].mxu0
        %v1197 = vadd.f32 0.0, %v1196
        %v1198 = vpop.f32.mrb[0].mxu0
        %v1199 = vadd.f32 0.0, %v1198
        %1200 = vmatprep.mubr.f32.mxu0 %v856
        %1201 = vmatmul.mubr.f32.gmra.mrb[0].mxu0 %v855
        %v1202 = vpop.f32.mrb[0].mxu0
        %v1203 = vadd.f32 0.0, %v1202
        %v1204 = vpop.f32.mrb[0].mxu0
        %v1205 = vadd.f32 0.0, %v1204
        %1206 = vmatprep.mubr.f32.mxu0 %v858
        %1207 = vmatmul.mubr.f32.gmra.mrb[0].mxu0 %v857
        %v1208 = vpop.f32.mrb[0].mxu0
        %v1209 = vadd.f32 0.0, %v1208
        %v1210 = vpop.f32.mrb[0].mxu0
        %v1211 = vadd.f32 0.0, %v1210
        %1212 = vdwg.mxu0
        %1213 = vmatprep.subr.mxu0 %v1169
        %1214 = vmatpush1.xpose.msra.mxu0 %v1167
        %1215 = vmatprep.subr.mxu0 %v1175
        %1216 = vmatpush1.xpose.msra.mxu0 %v1173
        %1217 = vmatprep.subr.mxu0 %v1181
        %1218 = vmatpush1.xpose.msra.mxu0 %v1179
        %1219 = vmatprep.subr.mxu0 %v1187
        %1220 = vmatpush1.xpose.msra.mxu0 %v1185
        %1221 = vmatprep.subr.mxu0 %v1193
        %1222 = vmatpush1.xpose.msra.mxu0 %v1191
        %1223 = vmatprep.subr.mxu0 %v1199
        %1224 = vmatpush1.xpose.msra.mxu0 %v1197
        %1225 = vmatprep.subr.mxu0 %v1205
        %1226 = vmatpush1.xpose.msra.mxu0 %v1203
        %1227 = vmatprep.subr.mxu0 %v1211
        %1228 = vmatpush1.xpose.msra.mxu0 %v1209
        %1229 = vmatprep.subr.mxu0 0.0
        %1230 = vmatpush1.xpose.msra.mxu0 0.0
        %1231 = vmatprep.subr.mxu0 0.0
        %1232 = vmatpush1.xpose.msra.mxu0 0.0
        %1233 = vmatprep.subr.mxu0 0.0
        %1234 = vmatpush1.xpose.msra.mxu0 0.0
        %1235 = vmatprep.subr.mxu0 0.0
        %1236 = vmatpush1.xpose.msra.mxu0 0.0
        %1237 = vmatprep.subr.mxu0 0.0
        %1238 = vmatpush1.xpose.msra.mxu0 0.0
        %1239 = vmatprep.subr.mxu0 0.0
        %1240 = vmatpush1.xpose.msra.mxu0 0.0
        %1241 = vmatprep.subr.mxu0 0.0
        %1242 = vmatpush1.xpose.msra.mxu0 0.0
        %1243 = vmatprep.subr.mxu0 0.0
        %1244 = vmatpush1.xpose.msra.mxu0 0.0
        %1245 = vmatprep.subr.mxu0 0.0
        %1246 = vmatpush1.xpose.msra.mxu0 0.0
        %1247 = vmatprep.subr.mxu0 0.0
        %1248 = vmatpush1.xpose.msra.mxu0 0.0
        %1249 = vmatprep.subr.mxu0 0.0
        %1250 = vmatpush1.xpose.msra.mxu0 0.0
        %1251 = vmatprep.subr.mxu0 0.0
        %1252 = vmatpush1.xpose.msra.mxu0 0.0
        %1253 = vmatprep.subr.mxu0 0.0
        %1254 = vmatpush1.xpose.msra.mxu0 0.0
        %1255 = vmatprep.subr.mxu0 0.0
        %1256 = vmatpush1.xpose.msra.mxu0 0.0
        %1257 = vmatprep.subr.mxu0 0.0
        %1258 = vmatpush1.xpose.msra.mxu0 0.0
        %1259 = vmatprep.subr.mxu0 0.0
        %1260 = vmatpush1.xpose.msra.mxu0 0.0
        %1261 = vmatprep.subr.mxu0 0.0
        %1262 = vmatpush1.xpose.msra.mxu0 0.0
        %1263 = vmatprep.subr.mxu0 0.0
        %1264 = vmatpush1.xpose.msra.mxu0 0.0
        %1265 = vmatprep.subr.mxu0 0.0
        %1266 = vmatpush1.xpose.msra.mxu0 0.0
        %1267 = vmatprep.subr.mxu0 0.0
        %1268 = vmatpush1.xpose.msra.mxu0 0.0
        %1269 = vmatprep.subr.mxu0 0.0
        %1270 = vmatpush1.xpose.msra.mxu0 0.0
        %1271 = vmatprep.subr.mxu0 0.0
        %1272 = vmatpush1.xpose.msra.mxu0 0.0
        %1273 = vmatprep.subr.mxu0 0.0
        %1274 = vmatpush1.xpose.msra.mxu0 0.0
        %1275 = vmatprep.subr.mxu0 0.0
        %1276 = vmatpush1.xpose.msra.mxu0 0.0
        %1277 = vmatprep.mubr.f32.mxu0 %v992
        %1278 = vmatmul.mubr.f32.gmra.mrb[0].mxu0 %v990
        %v1279 = vpop.f32.mrb[0].mxu0
        %v1280 = vadd.f32 0.0, %v1279
        %v1281 = vpop.f32.mrb[0].mxu0
        %1282 = vmatprep.mubr.f32.mxu0 %v998
        %1283 = vmatmul.mubr.f32.gmra.mrb[0].mxu0 %v996
        %v1284 = vpop.f32.mrb[0].mxu0
        %v1285 = vadd.f32 0.0, %v1284
        %v1286 = vpop.f32.mrb[0].mxu0
        %1287 = vmatprep.mubr.f32.mxu0 %v1004
        %1288 = vmatmul.mubr.f32.gmra.mrb[0].mxu0 %v1002
        %v1289 = vpop.f32.mrb[0].mxu0
        %v1290 = vadd.f32 0.0, %v1289
        %v1291 = vpop.f32.mrb[0].mxu0
        %1292 = vmatprep.mubr.f32.mxu0 %v1010
        %1293 = vmatmul.mubr.f32.gmra.mrb[0].mxu0 %v1008
        %v1294 = vpop.f32.mrb[0].mxu0
        %v1295 = vadd.f32 0.0, %v1294
        %v1296 = vpop.f32.mrb[0].mxu0
        %1297 = vmatprep.mubr.f32.mxu0 %v1016
        %1298 = vmatmul.mubr.f32.gmra.mrb[0].mxu0 %v1014
        %v1299 = vpop.f32.mrb[0].mxu0
        %v1300 = vadd.f32 0.0, %v1299
        %v1301 = vpop.f32.mrb[0].mxu0
        %1302 = vmatprep.mubr.f32.mxu0 %v1022
        %1303 = vmatmul.mubr.f32.gmra.mrb[0].mxu0 %v1020
        %v1304 = vpop.f32.mrb[0].mxu0
        %v1305 = vadd.f32 0.0, %v1304
        %v1306 = vpop.f32.mrb[0].mxu0
        %1307 = vmatprep.mubr.f32.mxu0 %v1028
        %1308 = vmatmul.mubr.f32.gmra.mrb[0].mxu0 %v1026
        %v1309 = vpop.f32.mrb[0].mxu0
        %v1310 = vadd.f32 0.0, %v1309
        %v1311 = vpop.f32.mrb[0].mxu0
        %1312 = vmatprep.mubr.f32.mxu0 %v1034
        %1313 = vmatmul.mubr.f32.gmra.mrb[0].mxu0 %v1032
        %v1314 = vpop.f32.mrb[0].mxu0
        %v1315 = vadd.f32 0.0, %v1314
        %v1316 = vpop.f32.mrb[0].mxu0
        %1317 = vdwg.mxu0
        %v1318 = vmul.f32 %v1280, 0.0625
        %v1319 = vmul.f32 %v1285, 0.0625
        %v1320 = vmul.f32 %v1290, 0.0625
        %v1321 = vmul.f32 %v1295, 0.0625
        %v1322 = vmul.f32 %v1300, 0.0625
        %v1323 = vmul.f32 %v1305, 0.0625
        %v1324 = vmul.f32 %v1310, 0.0625
        %v1325 = vmul.f32 %v1315, 0.0625
        %vm1326 = vcmask 523264
        %v1327 = vsel %vm1326, %v1318, -inf
        %1328 = vmax.xlane.f32.xlu0 %v1327
        %v1329 = vpop.xlane.xlu0 %1328
        %v1330 = vsel %vm1326, %v1319, -inf
        %1331 = vmax.xlane.f32.xlu0 %v1330
        %v1332 = vpop.xlane.xlu0 %1331
        %v1333 = vsel %vm1326, %v1320, -inf
        %1334 = vmax.xlane.f32.xlu0 %v1333
        %v1335 = vpop.xlane.xlu0 %1334
        %v1336 = vsel %vm1326, %v1321, -inf
        %1337 = vmax.xlane.f32.xlu0 %v1336
        %v1338 = vpop.xlane.xlu0 %1337
        %v1339 = vsel %vm1326, %v1322, -inf
        %1340 = vmax.xlane.f32.xlu0 %v1339
        %v1341 = vpop.xlane.xlu0 %1340
        %v1342 = vsel %vm1326, %v1323, -inf
        %1343 = vmax.xlane.f32.xlu0 %v1342
        %v1344 = vpop.xlane.xlu0 %1343
        %v1345 = vsel %vm1326, %v1324, -inf
        %1346 = vmax.xlane.f32.xlu0 %v1345
        %v1347 = vpop.xlane.xlu0 %1346
        %v1348 = vsel %vm1326, %v1325, -inf
        %1349 = vmax.xlane.f32.xlu0 %v1348
        %v1350 = vpop.xlane.xlu0 %1349
        %v1351 = vsub.f32 %v1318, %v1329
        %v1352 = vsub.f32 %v1319, %v1332
        %v1353 = vsub.f32 %v1320, %v1335
        %v1354 = vsub.f32 %v1321, %v1338
        %v1355 = vsub.f32 %v1322, %v1341
        %v1356 = vsub.f32 %v1323, %v1344
        %v1357 = vsub.f32 %v1324, %v1347
        %v1358 = vsub.f32 %v1325, %v1350
        %v1359 = vmul.f32 %v1351, 1.442695
        %v1360 = vpow.pop %v1359
        %v1361 = vmul.f32 %v1352, 1.442695
        %v1362 = vpow.pop %v1361
        %v1363 = vmul.f32 %v1353, 1.442695
        %v1364 = vpow.pop %v1363
        %v1365 = vmul.f32 %v1354, 1.442695
        %v1366 = vpow.pop %v1365
        %v1367 = vmul.f32 %v1355, 1.442695
        %v1368 = vpow.pop %v1367
        %v1369 = vmul.f32 %v1356, 1.442695
        %v1370 = vpow.pop %v1369
        %v1371 = vmul.f32 %v1357, 1.442695
        %v1372 = vpow.pop %v1371
        %v1373 = vmul.f32 %v1358, 1.442695
        %v1374 = vpow.pop %v1373
        %v1375 = vsel %vm1326, %v1360, 0.0
        %1376 = vadd.xlane.f32.xlu0 %v1375
        %v1377 = vpop.xlane.xlu0 %1376
        %v1378 = vsel %vm1326, %v1362, 0.0
        %1379 = vadd.xlane.f32.xlu0 %v1378
        %v1380 = vpop.xlane.xlu0 %1379
        %v1381 = vsel %vm1326, %v1364, 0.0
        %1382 = vadd.xlane.f32.xlu0 %v1381
        %v1383 = vpop.xlane.xlu0 %1382
        %v1384 = vsel %vm1326, %v1366, 0.0
        %1385 = vadd.xlane.f32.xlu0 %v1384
        %v1386 = vpop.xlane.xlu0 %1385
        %v1387 = vsel %vm1326, %v1368, 0.0
        %1388 = vadd.xlane.f32.xlu0 %v1387
        %v1389 = vpop.xlane.xlu0 %1388
        %v1390 = vsel %vm1326, %v1370, 0.0
        %1391 = vadd.xlane.f32.xlu0 %v1390
        %v1392 = vpop.xlane.xlu0 %1391
        %v1393 = vsel %vm1326, %v1372, 0.0
        %1394 = vadd.xlane.f32.xlu0 %v1393
        %v1395 = vpop.xlane.xlu0 %1394
        %v1396 = vsel %vm1326, %v1374, 0.0
        %1397 = vadd.xlane.f32.xlu0 %v1396
        %v1398 = vpop.xlane.xlu0 %1397
        %v1399 = vrcp.pop %v1377
        %v1400 = vmul.f32 %v1360, %v1399
        %v1401 = vrcp.pop %v1380
        %v1402 = vmul.f32 %v1362, %v1401
        %v1403 = vrcp.pop %v1383
        %v1404 = vmul.f32 %v1364, %v1403
        %v1405 = vrcp.pop %v1386
        %v1406 = vmul.f32 %v1366, %v1405
        %v1407 = vrcp.pop %v1389
        %v1408 = vmul.f32 %v1368, %v1407
        %v1409 = vrcp.pop %v1392
        %v1410 = vmul.f32 %v1370, %v1409
        %v1411 = vrcp.pop %v1395
        %v1412 = vmul.f32 %v1372, %v1411
        %v1413 = vrcp.pop %v1398
        %v1414 = vmul.f32 %v1374, %v1413
        %v1415 = vld [vmem:[%s447] sm:$0xff]
        %v1416 = vld [vmem:[%s447 + $0x8] sm:$0xff]
        %v1417 = vld [vmem:[%s447 + $0x10] sm:$0xff]
        %v1418 = vld [vmem:[%s447 + $0x18] sm:$0xff]
        %v1419 = vld [vmem:[%s447 + $0x20] sm:$0xff]
        %v1420 = vld [vmem:[%s447 + $0x28] sm:$0xff]
        %v1421 = vld [vmem:[%s447 + $0x30] sm:$0xff]
        %v1422 = vld [vmem:[%s447 + $0x38] sm:$0xff]
        %v1424 = vsel %vm1326, %v1400, 0
        %v1427 = vsel %vm1326, %v1402, 0
        %v1430 = vsel %vm1326, %v1404, 0
        %v1433 = vsel %vm1326, %v1406, 0
        %v1436 = vsel %vm1326, %v1408, 0
        %v1439 = vsel %vm1326, %v1410, 0
        %v1442 = vsel %vm1326, %v1412, 0
        %v1445 = vsel %vm1326, %v1414, 0
        %1447 = vmatprep.subr.mxu0 0.0
        %1448 = vmatpush1.msra.mxu0 %v1415
        %1449 = vmatprep.subr.mxu0 0.0
        %1450 = vmatpush1.msra.mxu0 %v1416
        %1451 = vmatprep.subr.mxu0 0.0
        %1452 = vmatpush1.msra.mxu0 %v1417
        %1453 = vmatprep.subr.mxu0 0.0
        %1454 = vmatpush1.msra.mxu0 %v1418
        %1455 = vmatprep.subr.mxu0 0.0
        %1456 = vmatpush1.msra.mxu0 %v1419
        %1457 = vmatprep.subr.mxu0 0.0
        %1458 = vmatpush1.msra.mxu0 %v1420
        %1459 = vmatprep.subr.mxu0 0.0
        %1460 = vmatpush1.msra.mxu0 %v1421
        %1461 = vmatprep.subr.mxu0 0.0
        %1462 = vmatpush1.msra.mxu0 %v1422
        %1463 = vmatprep.subr.mxu0 0.0
        %1464 = vmatpush1.msra.mxu0 0.0
        %1465 = vmatprep.subr.mxu0 0.0
        %1466 = vmatpush1.msra.mxu0 0.0
        %1467 = vmatprep.subr.mxu0 0.0
        %1468 = vmatpush1.msra.mxu0 0.0
        %1469 = vmatprep.subr.mxu0 0.0
        %1470 = vmatpush1.msra.mxu0 0.0
        %1471 = vmatprep.subr.mxu0 0.0
        %1472 = vmatpush1.msra.mxu0 0.0
        %1473 = vmatprep.subr.mxu0 0.0
        %1474 = vmatpush1.msra.mxu0 0.0
        %1475 = vmatprep.subr.mxu0 0.0
        %1476 = vmatpush1.msra.mxu0 0.0
        %1477 = vmatprep.subr.mxu0 0.0
        %1478 = vmatpush1.msra.mxu0 0.0
        %1479 = vmatprep.subr.mxu0 0.0
        %1480 = vmatpush1.msra.mxu0 0.0
        %1481 = vmatprep.subr.mxu0 0.0
        %1482 = vmatpush1.msra.mxu0 0.0
        %1483 = vmatprep.subr.mxu0 0.0
        %1484 = vmatpush1.msra.mxu0 0.0
        %1485 = vmatprep.subr.mxu0 0.0
        %1486 = vmatpush1.msra.mxu0 0.0
        %1487 = vmatprep.subr.mxu0 0.0
        %1488 = vmatpush1.msra.mxu0 0.0
        %1489 = vmatprep.subr.mxu0 0.0
        %1490 = vmatpush1.msra.mxu0 0.0
        %1491 = vmatprep.subr.mxu0 0.0
        %1492 = vmatpush1.msra.mxu0 0.0
        %1493 = vmatprep.subr.mxu0 0.0
        %1494 = vmatpush1.msra.mxu0 0.0
        %1495 = vmatprep.subr.mxu0 0.0
        %1496 = vmatpush1.msra.mxu0 0.0
        %1497 = vmatprep.subr.mxu0 0.0
        %1498 = vmatpush1.msra.mxu0 0.0
        %1499 = vmatprep.subr.mxu0 0.0
        %1500 = vmatpush1.msra.mxu0 0.0
        %1501 = vmatprep.subr.mxu0 0.0
        %1502 = vmatpush1.msra.mxu0 0.0
        %1503 = vmatprep.subr.mxu0 0.0
        %1504 = vmatpush1.msra.mxu0 0.0
        %1505 = vmatprep.subr.mxu0 0.0
        %1506 = vmatpush1.msra.mxu0 0.0
        %1507 = vmatprep.subr.mxu0 0.0
        %1508 = vmatpush1.msra.mxu0 0.0
        %1509 = vmatprep.subr.mxu0 0.0
        %1510 = vmatpush1.msra.mxu0 0.0
        %1511 = vmatprep.mubr.f32.mxu0 0.0
        %1512 = vmatmul.mubr.f32.gmra.mrb[0].mxu0 %v1424
        %v1513 = vpop.f32.mrb[0].mxu0
        %v1514 = vadd.f32 0.0, %v1513
        %v1515 = vpop.f32.mrb[0].mxu0
        %1516 = vmatprep.mubr.f32.mxu0 0.0
        %1517 = vmatmul.mubr.f32.gmra.mrb[0].mxu0 %v1427
        %v1518 = vpop.f32.mrb[0].mxu0
        %v1519 = vadd.f32 0.0, %v1518
        %v1520 = vpop.f32.mrb[0].mxu0
        %1521 = vmatprep.mubr.f32.mxu0 0.0
        %1522 = vmatmul.mubr.f32.gmra.mrb[0].mxu0 %v1430
        %v1523 = vpop.f32.mrb[0].mxu0
        %v1524 = vadd.f32 0.0, %v1523
        %v1525 = vpop.f32.mrb[0].mxu0
        %1526 = vmatprep.mubr.f32.mxu0 0.0
        %1527 = vmatmul.mubr.f32.gmra.mrb[0].mxu0 %v1433
        %v1528 = vpop.f32.mrb[0].mxu0
        %v1529 = vadd.f32 0.0, %v1528
        %v1530 = vpop.f32.mrb[0].mxu0
        %1531 = vmatprep.mubr.f32.mxu0 0.0
        %1532 = vmatmul.mubr.f32.gmra.mrb[0].mxu0 %v1436
        %v1533 = vpop.f32.mrb[0].mxu0
        %v1534 = vadd.f32 0.0, %v1533
        %v1535 = vpop.f32.mrb[0].mxu0
        %1536 = vmatprep.mubr.f32.mxu0 0.0
        %1537 = vmatmul.mubr.f32.gmra.mrb[0].mxu0 %v1439
        %v1538 = vpop.f32.mrb[0].mxu0
        %v1539 = vadd.f32 0.0, %v1538
        %v1540 = vpop.f32.mrb[0].mxu0
        %1541 = vmatprep.mubr.f32.mxu0 0.0
        %1542 = vmatmul.mubr.f32.gmra.mrb[0].mxu0 %v1442
        %v1543 = vpop.f32.mrb[0].mxu0
        %v1544 = vadd.f32 0.0, %v1543
        %v1545 = vpop.f32.mrb[0].mxu0
        %1546 = vmatprep.mubr.f32.mxu0 0.0
        %1547 = vmatmul.mubr.f32.gmra.mrb[0].mxu0 %v1445
        %v1548 = vpop.f32.mrb[0].mxu0
        %v1549 = vadd.f32 0.0, %v1548
        %v1550 = vpop.f32.mrb[0].mxu0
        %1551 = vdwg.mxu0
        %v1552 = vadd.f32 %v458, %v474
        %v1553 = vadd.f32 %v459, %v475
        %v1554 = vadd.f32 %v460, %v476
        %v1555 = vadd.f32 %v461, %v477
        %v1556 = vadd.f32 %v462, %v478
        %v1557 = vadd.f32 %v463, %v479
        %v1558 = vadd.f32 %v464, %v480
        %v1559 = vadd.f32 %v465, %v481
        %v1560 = vadd.f32 %v466, %v482
        %v1561 = vadd.f32 %v467, %v483
        %v1562 = vadd.f32 %v468, %v484
        %v1563 = vadd.f32 %v469, %v485
        %v1564 = vadd.f32 %v470, %v486
        %v1565 = vadd.f32 %v471, %v487
        %v1566 = vadd.f32 %v472, %v488
        %v1567 = vadd.f32 %v473, %v489
        %1568 = vst [vmem:[%s425] sm:$0xff] %v1552
        %1569 = vst [vmem:[%s425 + $0x8] sm:$0xff] %v1553
        %1570 = vst [vmem:[%s425 + $0x10] sm:$0xff] %v1554
        %1571 = vst [vmem:[%s425 + $0x18] sm:$0xff] %v1555
        %1572 = vst [vmem:[%s425 + $0x20] sm:$0xff] %v1556
        %1573 = vst [vmem:[%s425 + $0x28] sm:$0xff] %v1557
        %1574 = vst [vmem:[%s425 + $0x30] sm:$0xff] %v1558
        %1575 = vst [vmem:[%s425 + $0x38] sm:$0xff] %v1559
        %1576 = vst [vmem:[%s425 + $0x40] sm:$0xff] %v1560
        %1577 = vst [vmem:[%s425 + $0x48] sm:$0xff] %v1561
        %1578 = vst [vmem:[%s425 + $0x50] sm:$0xff] %v1562
        %1579 = vst [vmem:[%s425 + $0x58] sm:$0xff] %v1563
        %1580 = vst [vmem:[%s425 + $0x60] sm:$0xff] %v1564
        %1581 = vst [vmem:[%s425 + $0x68] sm:$0xff] %v1565
        %1582 = vst [vmem:[%s425 + $0x70] sm:$0xff] %v1566
        %1583 = vst [vmem:[%s425 + $0x78] sm:$0xff] %v1567
        %v1584 = vld [vmem:[%s452] sm:$0xff]
        %v1585 = vld [vmem:[%s452 + $0x8] sm:$0xff]
        %v1586 = vld [vmem:[%s452 + $0x10] sm:$0xff]
        %v1587 = vld [vmem:[%s452 + $0x18] sm:$0xff]
        %v1588 = vld [vmem:[%s452 + $0x20] sm:$0xff]
        %v1589 = vld [vmem:[%s452 + $0x28] sm:$0xff]
        %v1590 = vld [vmem:[%s452 + $0x30] sm:$0xff]
        %v1591 = vld [vmem:[%s452 + $0x38] sm:$0xff]
        %v1592 = vadd.f32 %v1584, %v1514
        %v1593 = vadd.f32 %v1585, %v1519
        %v1594 = vadd.f32 %v1586, %v1524
        %v1595 = vadd.f32 %v1587, %v1529
        %v1596 = vadd.f32 %v1588, %v1534
        %v1597 = vadd.f32 %v1589, %v1539
        %v1598 = vadd.f32 %v1590, %v1544
        %v1599 = vadd.f32 %v1591, %v1549
        %1600 = vst [vmem:[%s457] sm:$0xff] %v1592
        %1601 = vst [vmem:[%s457 + $0x8] sm:$0xff] %v1593
        %1602 = vst [vmem:[%s457 + $0x10] sm:$0xff] %v1594
        %1603 = vst [vmem:[%s457 + $0x18] sm:$0xff] %v1595
        %1604 = vst [vmem:[%s457 + $0x20] sm:$0xff] %v1596
        %1605 = vst [vmem:[%s457 + $0x28] sm:$0xff] %v1597
        %1606 = vst [vmem:[%s457 + $0x30] sm:$0xff] %v1598
        %1607 = vst [vmem:[%s457 + $0x38] sm:$0xff] %v1599
        %s1608 = sand.u32 %s264, 1
        %s1609 = scalar_lea.sflag [#allocation3], %s1608
        %s1610 = sand.u32 %s264, 1
        %s1611 = smul.addr %s1610, 128
        %s1612 = scalar_lea.vmem [#allocation2], %s1611
        %p1613 = scmp.lt.s32.totalorder %s26, 1
        %s1614 = scalar_select %p1613, %s26, 1
        %s1615 = smul.addr %s1614, 8
        %s1616 = smul.addr %s1615, 8
        %s1617 = scalar_lea.vmem %s11, %s1616
        // Predicated region
        $region61: #{_lambda_.1} parent=59 // pred_check
          %p1618 = pneg %p274
        $region62: #{_lambda_.1} parent=59 // pred_check_branch
          %1620 = sbr.rel (%p1618) target = $region64
        $region63: #{_lambda_.1} parent=59 // pred_region
          %s1622 = ssub.s32 2048, 2048
          %1623 = vsyncadd %s1609, %s1622
          %s1624 = smul.addr %s26, 16
          %s1625 = smul.addr %s1624, 128
          %s1626 = scalar_lea.hbm %s10, %s1625
          %s1627 = sshll.u32 %s1612, 4
          %s1628 = int_to_ptr.vmem [resolvable:$true] %s1627
          %1633 = dma.vmem_to_hbm [thread:$0]  %s1628, 2048, %s1626, %s1609, 256, 256, 16
        $region64: #{_lambda_.1} parent=59 // pred_fallthru
          _
        // Predicated region
        $region65: #{_lambda_.1} parent=59 // pred_check
          %p1634 = pneg %p300
        $region66: #{_lambda_.1} parent=59 // pred_check_branch
          %1636 = sbr.rel (%p1634) target = $region68
        $region67: #{_lambda_.1} parent=59 // pred_region
          _
        $region68: #{_lambda_.1} parent=59 // pred_fallthru
          _
      $region60: #{_lambda_.1} parent=5 // pred_fallthru
        _
      %p1637 = scmp.le.s32.totalorder 2, %s21
      // Predicated region
      $region69: #{_lambda_.1} parent=5 // pred_check
        %p1638 = pneg %p1637
      $region70: #{_lambda_.1} parent=5 // pred_check_branch
        %1640 = sbr.rel (%p1638) target = $region72
      $region71: #{_lambda_.1} parent=5 // pred_region
        %s1641 = ssub.s32 %s21, 2
        // Predicated region
        $region73: #{_lambda_.1} parent=71 // pred_check
          %p1642 = pneg %p280
        $region74: #{_lambda_.1} parent=71 // pred_check_branch
          %1644 = sbr.rel (%p1642) target = $region76
        $region75: #{_lambda_.1} parent=71 // pred_region
          %s1645 = sand.u32 %s265, 1
          %s1646 = scalar_lea.sflag [#allocation3], %s1645
          %s1647 = sand.u32 %s265, 1
          %s1648 = smul.addr %s1647, 128
          %s1649 = scalar_lea.vmem [#allocation2], %s1648
          %1650 = dma.done %s1646, 2048
        $region76: #{_lambda_.1} parent=71 // pred_fallthru
          _
        // Predicated region
        $region77: #{_lambda_.1} parent=71 // pred_check
          %p1651 = pneg %p306
        $region78: #{_lambda_.1} parent=71 // pred_check_branch
          %1653 = sbr.rel (%p1651) target = $region80
        $region79: #{_lambda_.1} parent=71 // pred_region
          %p1654 = scmp.lt.s32.totalorder %s27, 1
          %s1655 = scalar_select %p1654, %s27, 1
          %s1656 = smul.addr %s1655, 8
          %s1657 = smul.addr %s1656, 8
          %s1658 = scalar_lea.vmem %s11, %s1657
        $region80: #{_lambda_.1} parent=71 // pred_fallthru
          _
      $region72: #{_lambda_.1} parent=5 // pred_fallthru
        _
    $region6: #{_lambda_.1} parent=1 // loop_footer
      %s25 = sadd.s32 1, %s21
    $region7: #{_lambda_.1} parent=1 // loop_footer_branch
      %20 = sbr.rel target = $region3
    $region8: #{_lambda_.1} parent=1 // loop_exit
      _
    %1659 = vsyncpa [#allocation3], 1
    %s1660 = scalar_lea.sflag [#allocation3], 1
    %1661 = vsyncpa %s1660, 1

</llo_original>
